<compile_context>
chip_gen: v5e
topology: v5e:2x2
jax: 0.10.0
libtpu: 0.0.40
codegen_flags: <defaults>
</compile_context>

<pallas_src>
import functools

import jax
import jax.numpy as jnp
from jax import lax
from jax.experimental import pallas as pl
from jax.experimental.pallas import tpu as pltpu

EPS = 1e-5
LANE = 128      # TPU lane width: all channel-like dims are zero-padded to this


def _pad_to(n, m):
    return ((n + m - 1) // m) * m


def _identity_affine(c):
    return jnp.stack([jnp.ones((c,), jnp.float32), jnp.zeros((c,), jnp.float32)])


# --------------------------------------------------------------------------
# Generic tiled matmul: bf16 MXU inputs, f32 accumulator, fused bias/act.
# --------------------------------------------------------------------------
def _mm_kernel(a_ref, b_ref, bias_ref, o_ref, acc_ref, *, activation):
    @pl.when(pl.program_id(2) == 0)
    def _init():
        acc_ref[...] = jnp.zeros_like(acc_ref)

    acc_ref[...] += jnp.dot(a_ref[...], b_ref[...],
                            preferred_element_type=jnp.float32)

    @pl.when(pl.program_id(2) == pl.num_programs(2) - 1)
    def _fini():
        acc = acc_ref[...] + bias_ref[...]
        if activation == "relu":
            acc = jnp.maximum(acc, 0.0)
        elif activation == "sigmoid":
            acc = jax.nn.sigmoid(acc)
        o_ref[...] = acc.astype(o_ref.dtype)


def _tile(dim, pref, base):
    """Largest tile <= pref that divides dim and is a multiple of base,
    falling back to the full dim (a full-extent block is always legal)."""
    if dim <= pref:
        return dim
    t = (pref // base) * base
    while t >= base:
        if dim % t == 0:
            return t
        t -= base
    return dim


def matmul_bias(a, b, bias=None, activation="none", tm=256, tn=256, tk=512):
    M, K = a.shape
    K2, N = b.shape
    assert K == K2
    if bias is None:
        bias = jnp.zeros((N,), jnp.float32)
    bias = bias.reshape(1, N).astype(jnp.float32)
    a = a.astype(jnp.bfloat16)
    b = b.astype(jnp.bfloat16)
    tm, tn, tk = _tile(M, tm, 8), _tile(N, tn, LANE), _tile(K, tk, LANE)
    return pl.pallas_call(
        functools.partial(_mm_kernel, activation=activation),
        out_shape=jax.ShapeDtypeStruct((M, N), jnp.float32),
        grid=(M // tm, N // tn, K // tk),
        in_specs=[
            pl.BlockSpec((tm, tk), lambda i, j, k: (i, k)),
            pl.BlockSpec((tk, tn), lambda i, j, k: (k, j)),
            pl.BlockSpec((1, tn), lambda i, j, k: (0, j)),
        ],
        out_specs=pl.BlockSpec((tm, tn), lambda i, j, k: (i, j)),
        scratch_shapes=[pltpu.VMEM((tm, tn), jnp.float32)],
        compiler_params=pltpu.CompilerParams(
            dimension_semantics=("parallel", "parallel", "arbitrary")),
    )(a, b, bias)


# --------------------------------------------------------------------------
# Fused conv kernel: (optional pending-BN affine on the input) -> conv as
# kh*kw shifted matmuls -> (+bias, optional relu) -> per-batch sum/sumsq of
# the output (feeds the *next* BatchNorm).  No im2col materialization.
# --------------------------------------------------------------------------
def _conv_kernel(planes_ref, aff_ref, w_ref, bias_ref, y_ref, sum_ref, sq_ref,
                 *scratch, kh, kw, sh, sw, pad, ho, wo, cin_p, relu_out,
                 apply_affine):
    tn = w_ref.shape[1]
    bias = bias_ref[...]                                       # (1, tn)

    if apply_affine:
        # Pending BatchNorm on the input (stride-1 convs only).  Normalize into
        # a VMEM scratch, then re-zero the spatial-padding border (the affine
        # shift must not leak into the zero padding).
        xn_ref = scratch[0]
        hq, wq = xn_ref.shape[0], xn_ref.shape[1]
        xn_ref[...] = planes_ref[0] * aff_ref[0:1, :] + aff_ref[1:2, :]
        if pad > 0:
            zrow = jnp.zeros((pad, wq, cin_p), jnp.float32)
            zcol = jnp.zeros((hq, pad, cin_p), jnp.float32)
            xn_ref[0:pad, :, :] = zrow
            xn_ref[hq - pad:hq, :, :] = zrow
            xn_ref[:, 0:pad, :] = zcol
            xn_ref[:, wq - pad:wq, :] = zcol

        def tap_full(i, j):
            return xn_ref[i:i + ho, j:j + wo, :]

        def tap_row(r, i, j):
            return xn_ref[i + r, j:j + wo, :]
    else:
        # Raw (already-final) input; stride handled via parity planes so each
        # tap is an unstrided static slice.
        def tap_full(i, j):
            p = (i % sh) * sw + (j % sw)
            return planes_ref[p, i // sh:i // sh + ho, j // sw:j // sw + wo, :]

        def tap_row(r, i, j):
            p = (i % sh) * sw + (j % sw)
            return planes_ref[p, i // sh + r, j // sw:j // sw + wo, :]

    if wo % 8 == 0:
        # Lane/sublane friendly path: flatten each tap to (ho*wo, cin) and run
        # kh*kw big MXU matmuls.
        acc = jnp.zeros((ho * wo, tn), jnp.float32)
        for i in range(kh):
            for j in range(kw):
                xs = tap_full(i, j).reshape(ho * wo, cin_p).astype(jnp.bfloat16)
                wt = w_ref[(i * kw + j) * cin_p:(i * kw + j + 1) * cin_p, :]
                acc = acc + jnp.dot(xs, wt, preferred_element_type=jnp.float32)
        acc = acc + bias
        if relu_out:
            acc = jnp.maximum(acc, 0.0)
        y_ref[0] = acc
        sum_ref[0] = jnp.sum(acc, axis=0, keepdims=True)
        sq_ref[0] = jnp.sum(acc * acc, axis=0, keepdims=True)
    else:
        # Tiny spatial tail (wo < 8): accumulate one output row at a time so
        # every in-kernel tensor stays 2-D (no vector reshapes needed).
        ssum = jnp.zeros((1, tn), jnp.float32)
        ssq = jnp.zeros((1, tn), jnp.float32)
        for r in range(ho):
            acc_r = jnp.zeros((wo, tn), jnp.float32)
            for i in range(kh):
                for j in range(kw):
                    xs = tap_row(r, i, j).astype(jnp.bfloat16)
                    wt = w_ref[(i * kw + j) * cin_p:(i * kw + j + 1) * cin_p, :]
                    acc_r = acc_r + jnp.dot(xs, wt,
                                            preferred_element_type=jnp.float32)
            acc_r = acc_r + bias
            if relu_out:
                acc_r = jnp.maximum(acc_r, 0.0)
            y_ref[0, r * wo:(r + 1) * wo, :] = acc_r
            ssum = ssum + jnp.sum(acc_r, axis=0, keepdims=True)
            ssq = ssq + jnp.sum(acc_r * acc_r, axis=0, keepdims=True)
        sum_ref[0] = ssum
        sq_ref[0] = ssq


def _make_planes(x4, kh, kw, sh, sw, pad):
    """Spatially zero-pad and parity-decompose (XLA glue, same byte count as
    the input -- NOT a 9x im2col) so each conv tap is an unstrided slice."""
    B, H, W, C = x4.shape
    xp = jnp.pad(x4, ((0, 0), (pad, pad), (pad, pad), (0, 0))) if pad > 0 else x4
    Hp, Wp = H + 2 * pad, W + 2 * pad
    ho = (Hp - kh) // sh + 1
    wo = (Wp - kw) // sw + 1
    Hp2, Wp2 = _pad_to(Hp, sh), _pad_to(Wp, sw)
    if (Hp2, Wp2) != (Hp, Wp):
        xp = jnp.pad(xp, ((0, 0), (0, Hp2 - Hp), (0, Wp2 - Wp), (0, 0)))
    if sh == 1 and sw == 1:
        planes = xp[:, None]
    else:
        planes = jnp.stack([xp[:, p::sh, q::sw, :]
                            for p in range(sh) for q in range(sw)], axis=1)
    P, Hq, Wq = planes.shape[1], planes.shape[2], planes.shape[3]
    return planes.reshape(B * P, Hq, Wq, C), P, Hq, Wq, ho, wo


def conv_bn_stats(x4, in_affine, w_mat, bias_p, stride, pad, kh, kw, relu_out):
    """conv (+ fused pending-BN input affine, + optional relu) and per-batch
    sum/sumsq of the output.  Returns (y, ysum, ysq, ho, wo)."""
    B, H, W, cin_p = x4.shape
    sh = sw = stride
    planes, P, Hq, Wq, ho, wo = _make_planes(x4, kh, kw, sh, sw, pad)
    cout_p = w_mat.shape[1]
    apply_affine = in_affine is not None
    if apply_affine:
        assert sh == 1 and sw == 1, "pending-BN input only occurs for stride-1 convs"
        aff = in_affine
    else:
        aff = _identity_affine(cin_p)
    if bias_p is None:
        bias_p = jnp.zeros((1, cout_p), jnp.float32)

    tn = LANE if cout_p % LANE == 0 else cout_p
    n_ct = cout_p // tn
    kernel = functools.partial(
        _conv_kernel, kh=kh, kw=kw, sh=sh, sw=sw, pad=pad, ho=ho, wo=wo,
        cin_p=cin_p, relu_out=relu_out, apply_affine=apply_affine)
    scratch = [pltpu.VMEM((Hq, Wq, cin_p), jnp.float32)] if apply_affine else []

    y, ysum, ysq = pl.pallas_call(
        kernel,
        out_shape=(jax.ShapeDtypeStruct((B, ho * wo, cout_p), jnp.float32),
                   jax.ShapeDtypeStruct((B, 1, cout_p), jnp.float32),
                   jax.ShapeDtypeStruct((B, 1, cout_p), jnp.float32)),
        grid=(B, n_ct),
        in_specs=[
            pl.BlockSpec((P, Hq, Wq, cin_p), lambda b, n: (b, 0, 0, 0)),
            pl.BlockSpec((2, cin_p), lambda b, n: (0, 0)),
            pl.BlockSpec((kh * kw * cin_p, tn), lambda b, n: (0, n)),
            pl.BlockSpec((1, tn), lambda b, n: (0, n)),
        ],
        out_specs=(
            pl.BlockSpec((1, ho * wo, tn), lambda b, n: (b, 0, n)),
            pl.BlockSpec((1, 1, tn), lambda b, n: (b, 0, n)),
            pl.BlockSpec((1, 1, tn), lambda b, n: (b, 0, n)),
        ),
        scratch_shapes=scratch,
        compiler_params=pltpu.CompilerParams(
            dimension_semantics=("parallel", "parallel")),
    )(planes, aff, w_mat, bias_p)
    return y, ysum, ysq, ho, wo


def bn_affine(ysum, ysq, gamma_p, beta_p, count):
    """Training-mode BatchNorm moments -> per-channel (scale, shift).
    Tiny per-channel math: plain JAX glue on (.., C) partial sums."""
    c = gamma_p.shape[0]
    s1 = jnp.sum(ysum.reshape(-1, c), axis=0)
    s2 = jnp.sum(ysq.reshape(-1, c), axis=0)
    mean = s1 / count
    var = jnp.maximum(s2 / count - mean * mean, 0.0)        # biased (training)
    scale = gamma_p * lax.rsqrt(var + EPS)
    shift = beta_p - mean * scale
    return jnp.stack([scale, shift], axis=0)                 # (2, C)


# --------------------------------------------------------------------------
# Fused SE + residual: bn2(z) -> squeeze -> FC1 -> relu -> FC2 -> sigmoid ->
# scale -> + bn_r(residual) -> relu, one kernel per batch element.
# --------------------------------------------------------------------------
def _se_kernel(z_ref, zaff_ref, r_ref, raff_ref, w1_ref, b1_ref, w2_ref,
               b2_ref, o_ref):
    z = z_ref[0] * zaff_ref[0:1, :] + zaff_ref[1:2, :]        # (HW, Cp)
    r = r_ref[0] * raff_ref[0:1, :] + raff_ref[1:2, :]
    s = jnp.mean(z, axis=0, keepdims=True)                    # (1, Cp)
    h = jnp.maximum(
        jnp.dot(s, w1_ref[...], preferred_element_type=jnp.float32)
        + b1_ref[...], 0.0)
    g = jax.nn.sigmoid(
        jnp.dot(h, w2_ref[...], preferred_element_type=jnp.float32)
        + b2_ref[...])
    o_ref[0] = jnp.maximum(z * g + r, 0.0)


def se_residual(z, z_aff, r, r_aff, w1, b1, w2, b2):
    B, HW, Cp = z.shape
    return pl.pallas_call(
        _se_kernel,
        out_shape=jax.ShapeDtypeStruct((B, HW, Cp), jnp.float32),
        grid=(B,),
        in_specs=[
            pl.BlockSpec((1, HW, Cp), lambda b: (b, 0, 0)),
            pl.BlockSpec((2, Cp), lambda b: (0, 0)),
            pl.BlockSpec((1, HW, Cp), lambda b: (b, 0, 0)),
            pl.BlockSpec((2, Cp), lambda b: (0, 0)),
            pl.BlockSpec(w1.shape, lambda b: (0, 0)),
            pl.BlockSpec(b1.shape, lambda b: (0, 0)),
            pl.BlockSpec(w2.shape, lambda b: (0, 0)),
            pl.BlockSpec(b2.shape, lambda b: (0, 0)),
        ],
        out_specs=pl.BlockSpec((1, HW, Cp), lambda b: (b, 0, 0)),
        compiler_params=pltpu.CompilerParams(dimension_semantics=("parallel",)),
    )(z, z_aff, r, r_aff, w1, b1, w2, b2)


# --------------------------------------------------------------------------
# Row-tiled sum / sumsq (accumulator pattern) for the attention BatchNorm1d.
# --------------------------------------------------------------------------
def _stats_kernel(x_ref, sum_ref, sq_ref):
    @pl.when(pl.program_id(0) == 0)
    def _init():
        sum_ref[...] = jnp.zeros_like(sum_ref)
        sq_ref[...] = jnp.zeros_like(sq_ref)

    x = x_ref[...]
    sum_ref[...] += jnp.sum(x, axis=0, keepdims=True)
    sq_ref[...] += jnp.sum(x * x, axis=0, keepdims=True)


def row_stats(x, tm=512):
    M, C = x.shape
    tm = _tile(M, tm, 8)
    return pl.pallas_call(
        _stats_kernel,
        out_shape=(jax.ShapeDtypeStruct((1, C), jnp.float32),
                   jax.ShapeDtypeStruct((1, C), jnp.float32)),
        grid=(M // tm,),
        in_specs=[pl.BlockSpec((tm, C), lambda i: (i, 0))],
        out_specs=(pl.BlockSpec((1, C), lambda i: (0, 0)),
                   pl.BlockSpec((1, C), lambda i: (0, 0))),
        compiler_params=pltpu.CompilerParams(dimension_semantics=("arbitrary",)),
    )(x)


# --------------------------------------------------------------------------
# Fused attention tail: BN1d affine -> conv1d(128->D) -> softmax over time ->
# weighted sum (SAP) -> final FC, one kernel per batch element.
# --------------------------------------------------------------------------
def _sap_kernel(x_ref, h_ref, aff_ref, w2_ref, b2_ref, fcw_ref, fcb_ref, o_ref):
    hb = h_ref[0] * aff_ref[0:1, :] + aff_ref[1:2, :]                 # (T, 128)
    logits = jnp.dot(hb.astype(jnp.bfloat16), w2_ref[...],
                     preferred_element_type=jnp.float32) + b2_ref[...]  # (T, Dp)
    m = jnp.max(logits, axis=0, keepdims=True)
    e = jnp.exp(logits - m)
    w = e / jnp.sum(e, axis=0, keepdims=True)                          # softmax(T)
    pooled = jnp.sum(x_ref[0] * w, axis=0, keepdims=True)              # (1, Dp)
    o_ref[0] = (jnp.dot(pooled, fcw_ref[...],
                        preferred_element_type=jnp.float32) + fcb_ref[...])


def sap_fc(x_btd, h_flat, att_aff, w2_p, b2_p, fc_w_p, fc_b_p):
    B, T, Dp = x_btd.shape
    Np = fc_w_p.shape[1]
    h3 = h_flat.reshape(B, T, h_flat.shape[1])
    out = pl.pallas_call(
        _sap_kernel,
        out_shape=jax.ShapeDtypeStruct((B, 1, Np), jnp.float32),
        grid=(B,),
        in_specs=[
            pl.BlockSpec((1, T, Dp), lambda b: (b, 0, 0)),
            pl.BlockSpec((1, T, h3.shape[2]), lambda b: (b, 0, 0)),
            pl.BlockSpec(att_aff.shape, lambda b: (0, 0)),
            pl.BlockSpec(w2_p.shape, lambda b: (0, 0)),
            pl.BlockSpec(b2_p.shape, lambda b: (0, 0)),
            pl.BlockSpec(fc_w_p.shape, lambda b: (0, 0)),
            pl.BlockSpec(fc_b_p.shape, lambda b: (0, 0)),
        ],
        out_specs=pl.BlockSpec((1, 1, Np), lambda b: (b, 0, 0)),
        compiler_params=pltpu.CompilerParams(dimension_semantics=("parallel",)),
    )(x_btd, h3, att_aff, w2_p, b2_p, fc_w_p, fc_b_p)
    return out[:, 0, :]


# --------------------------------------------------------------------------
# SEBasicBlock + full ResNetSE forward
# --------------------------------------------------------------------------
def se_basic_block(x4, x_aff, p, stride):
    """x4 (B,H,W,Cin_p) f32; x_aff = pending per-channel (scale, shift) or None.
    conv3x3 -> relu -> bn1 -> conv3x3 -> bn2 -> SE -> +residual -> relu."""
    B, H, W, cin_p = x4.shape
    cp = p["bn1_g"].shape[0]

    y1, s1, q1, ho, wo = conv_bn_stats(x4, x_aff, p["conv1_w"], None,
                                       stride, 1, 3, 3, relu_out=True)
    aff1 = bn_affine(s1, q1, p["bn1_g"], p["bn1_b"], B * ho * wo)

    y2, s2, q2, _, _ = conv_bn_stats(y1.reshape(B, ho, wo, cp), aff1,
                                     p["conv2_w"], None, 1, 1, 3, 3,
                                     relu_out=False)
    aff2 = bn_affine(s2, q2, p["bn2_g"], p["bn2_b"], B * ho * wo)

    if "ds_w" in p:                       # downsample branch (1x1 conv + BN)
        r, sr, qr, _, _ = conv_bn_stats(x4, None, p["ds_w"], None,
                                        stride, 0, 1, 1, relu_out=False)
        r_aff = bn_affine(sr, qr, p["ds_bn_g"], p["ds_bn_b"], B * ho * wo)
    else:
        r = x4.reshape(B, H * W, cin_p)
        r_aff = x_aff if x_aff is not None else _identity_affine(cin_p)

    out = se_residual(y2, aff2, r, r_aff, p["se_w1"], p["se_b1"],
                      p["se_w2"], p["se_b2"])
    return out.reshape(B, ho, wo, cp), None


def resnetse_forward(params, x_nchw):
    B = x_nchw.shape[0]
    x = jnp.transpose(x_nchw, (0, 2, 3, 1)).astype(jnp.float32)   # NCHW -> BHWC
    x = jnp.pad(x, ((0, 0), (0, 0), (0, 0), (0, LANE - x.shape[3])))

    # stem: conv1(+bias) -> relu -> bn1 (stats fused into the conv kernel)
    y, s, q, H, W = conv_bn_stats(x, None, params["conv1_w"], params["conv1_b"],
                                  1, 1, 3, 3, relu_out=True)
    cp0 = params["bn1_g"].shape[0]
    x_aff = bn_affine(s, q, params["bn1_g"], params["bn1_b"], B * H * W)
    x4 = y.reshape(B, H, W, cp0)

    # layer1..layer4
    for li, layer_p in enumerate(params["layers"]):
        for bi, bp in enumerate(layer_p):
            stride = 2 if (li > 0 and bi == 0) else 1
            x4, x_aff = se_basic_block(x4, x_aff, bp, stride)
    assert x_aff is None

    # PyTorch: (B,C,H',W') -> (B, C*H', W'); attention/softmax over time W'.
    B, hf, tf, cpf = x4.shape
    x_btd = jnp.transpose(x4, (0, 2, 3, 1)).reshape(B, tf, cpf * hf)  # (B,T,Dp)
    dp = cpf * hf

    # attention FC1 (conv1d k=1) -> relu (tiled matmul), then BN1d batch stats
    h1 = matmul_bias(x_btd.reshape(B * tf, dp), params["att_w1"],
                     params["att_b1"], activation="relu")             # (B*T,128)
    s1, q1 = row_stats(h1)
    att_aff = bn_affine(s1, q1, params["att_bn_g"], params["att_bn_b"], B * tf)

    # fused: BN affine -> FC2 -> softmax(T) -> SAP weighted sum -> final FC
    out = sap_fc(x_btd, h1, att_aff, params["att_w2"], params["att_b2"],
                 params["fc_w"], params["fc_b"])
    return out[:, :params["n_out"]]


# --------------------------------------------------------------------------
# Deterministic parameter init (shapes follow the module __init__), stored in
# the padded / matrix layouts the kernels consume (conv weights in bf16).
# --------------------------------------------------------------------------
def init_params(key, num_filters, layers, n_mels, n_out, reduction=4):
    keys = iter(jax.random.split(key, 256))

    def conv_w(cout, cin, kh, kw):
        fan_out = cout * kh * kw
        return jax.random.normal(next(keys), (cout, cin, kh, kw),
                                 jnp.float32) * (2.0 / fan_out) ** 0.5

    def lin_w(cin, cout):
        return jax.random.normal(next(keys), (cin, cout),
                                 jnp.float32) * (1.0 / cin) ** 0.5

    def pad_vec(v, n):
        return jnp.pad(v.astype(jnp.float32), (0, n - v.shape[0]))

    def pad_row(v, n):
        return pad_vec(v, n).reshape(1, n)

    def pad_mat(w, r, c):
        return jnp.pad(w, ((0, r - w.shape[0]), (0, c - w.shape[1])))

    def conv_mat(w_oihw, cin_p, cout_p):
        cout, cin, kh, kw = w_oihw.shape
        w = jnp.transpose(w_oihw, (2, 3, 1, 0))                 # (kh,kw,cin,cout)
        w = jnp.pad(w, ((0, 0), (0, 0), (0, cin_p - cin), (0, cout_p - cout)))
        return w.reshape(kh * kw * cin_p, cout_p).astype(jnp.bfloat16)

    cps = [_pad_to(nf, LANE) for nf in num_filters]

    p = {
        "conv1_w": conv_mat(conv_w(num_filters[0], 1, 3, 3), LANE, cps[0]),
        "conv1_b": pad_row(jnp.zeros((num_filters[0],), jnp.float32), cps[0]),
        "bn1_g": pad_vec(jnp.ones((num_filters[0],)), cps[0]),
        "bn1_b": pad_vec(jnp.zeros((num_filters[0],)), cps[0]),
    }

    inplanes, inp_p = num_filters[0], cps[0]
    layer_params = []
    for li, (planes, nblocks) in enumerate(zip(num_filters, layers)):
        cp = cps[li]
        first_stride = 1 if li == 0 else 2
        blocks = []
        for bi in range(nblocks):
            s = first_stride if bi == 0 else 1
            hidden = max(planes // reduction, 1)
            hid_p = _pad_to(hidden, LANE)
            bp = {
                "conv1_w": conv_mat(conv_w(planes, inplanes, 3, 3), inp_p, cp),
                "bn1_g": pad_vec(jnp.ones((planes,)), cp),
                "bn1_b": pad_vec(jnp.zeros((planes,)), cp),
                "conv2_w": conv_mat(conv_w(planes, planes, 3, 3), cp, cp),
                "bn2_g": pad_vec(jnp.ones((planes,)), cp),
                "bn2_b": pad_vec(jnp.zeros((planes,)), cp),
                "se_w1": pad_mat(lin_w(planes, hidden), cp, hid_p),
                "se_b1": pad_row(jnp.zeros((hidden,), jnp.float32), hid_p),
                "se_w2": pad_mat(lin_w(hidden, planes), hid_p, cp),
                "se_b2": pad_row(jnp.zeros((planes,), jnp.float32), cp),
            }
            if s != 1 or inplanes != planes:
                bp["ds_w"] = conv_mat(conv_w(planes, inplanes, 1, 1), inp_p, cp)
                bp["ds_bn_g"] = pad_vec(jnp.ones((planes,)), cp)
                bp["ds_bn_b"] = pad_vec(jnp.zeros((planes,)), cp)
            blocks.append(bp)
            inplanes, inp_p = planes, cp
        layer_params.append(blocks)
    p["layers"] = layer_params

    hf = n_mels // 8
    C, Cp = num_filters[3], cps[3]
    D, Dp = C * hf, Cp * hf
    np_out = _pad_to(n_out, LANE)

    w1 = lin_w(D, 128).reshape(C, hf, 128)
    w1 = jnp.pad(w1, ((0, Cp - C), (0, 0), (0, 0))).reshape(Dp, 128)
    p["att_w1"] = w1.astype(jnp.bfloat16)
    p["att_b1"] = jnp.zeros((1, 128), jnp.float32)
    p["att_bn_g"] = jnp.ones((128,), jnp.float32)
    p["att_bn_b"] = jnp.zeros((128,), jnp.float32)

    w2 = lin_w(128, D).reshape(128, C, hf)
    w2 = jnp.pad(w2, ((0, 0), (0, Cp - C), (0, 0))).reshape(128, Dp)
    p["att_w2"] = w2.astype(jnp.bfloat16)
    p["att_b2"] = jnp.zeros((1, Dp), jnp.float32)

    fcw = lin_w(D, n_out).reshape(C, hf, n_out)
    fcw = jnp.pad(fcw, ((0, Cp - C), (0, 0), (0, np_out - n_out)))
    p["fc_w"] = fcw.reshape(Dp, np_out).astype(jnp.float32)
    p["fc_b"] = jnp.zeros((1, np_out), jnp.float32)
    p["n_out"] = n_out
    return p


if __name__ == "__main__":
    # Small, forward-consistent config: num_filters=[8,16,32,64], layers=[1,1,1,1],
    # n_mels=16 (divisible by 8), T=16, nOut=32, encoder_type='SAP'.
    num_filters = [8, 16, 32, 64]
    layers = [1, 1, 1, 1]
    n_mels, T, n_out, B = 16, 16, 32, 2

    key = jax.random.PRNGKey(0)
    pkey, xkey = jax.random.split(key)
    params = init_params(pkey, num_filters, layers, n_mels, n_out)
    x = jax.random.normal(xkey, (B, 1, n_mels, T), jnp.float32)   # NCHW like PyTorch

    out = resnetse_forward(params, x)
    out = jax.block_until_ready(out)
    assert out.shape == (B, n_out), out.shape
    assert jnp.all(jnp.isfinite(out))
    print("KERNEL_OK")
</pallas_src>

<mosaic_0001>
module attributes {stable_mosaic.version = 11 : i64} {
  func.func @_conv_kernel(%arg0: i32, %arg1: i32, %arg2: memref<1x18x18x128xf32, #tpu.memory_space<vmem>>, %arg3: memref<2x128xf32, #tpu.memory_space<vmem>>, %arg4: memref<1152x128xbf16, #tpu.memory_space<vmem>>, %arg5: memref<1x128xf32, #tpu.memory_space<vmem>>, %arg6: memref<1x256x128xf32, #tpu.memory_space<vmem>>, %arg7: memref<1x1x128xf32, #tpu.memory_space<vmem>>, %arg8: memref<1x1x128xf32, #tpu.memory_space<vmem>>) attributes {dimension_semantics = [#tpu.dimension_semantics<parallel>, #tpu.dimension_semantics<parallel>], iteration_bounds = array<i64: 2, 1>, scalar_prefetch = 0 : i64, scratch_operands = 0 : i64, tpu.core_type = #tpu.core_type<tc>, window_params = [{transform_indices = @transform_0, window_bounds = array<i64: 1, 18, 18, 128>}, {pipeline_mode = #tpu.pipeline_mode<synchronous>, transform_indices = @transform_1, window_bounds = array<i64: 2, 128>}, {transform_indices = @transform_2, window_bounds = array<i64: 1152, 128>}, {transform_indices = @transform_3, window_bounds = array<i64: 1, 128>}, {transform_indices = @transform_4, window_bounds = array<i64: 1, 256, 128>}, {transform_indices = @transform_5, window_bounds = array<i64: 1, 1, 128>}, {transform_indices = @transform_6, window_bounds = array<i64: 1, 1, 128>}]} {
    %c0 = arith.constant 0 : index
    %c0_0 = arith.constant 0 : index
    %0 = vector.load %arg5[%c0, %c0_0] : memref<1x128xf32, #tpu.memory_space<vmem>>, vector<1x128xf32>
    %cst = arith.constant 0.000000e+00 : f32
    %1 = vector.broadcast %cst : f32 to vector<256x128xf32>
    %c0_1 = arith.constant 0 : index
    %c0_2 = arith.constant 0 : index
    %c0_3 = arith.constant 0 : index
    %c0_4 = arith.constant 0 : index
    %2 = vector.load %arg2[%c0_1, %c0_2, %c0_3, %c0_4] : memref<1x18x18x128xf32, #tpu.memory_space<vmem>>, vector<1x16x16x128xf32>
    %3 = vector.shape_cast %2 : vector<1x16x16x128xf32> to vector<16x16x128xf32>
    %4 = vector.shape_cast %3 : vector<16x16x128xf32> to vector<256x128xf32>
    %5 = arith.truncf %4 : vector<256x128xf32> to vector<256x128xbf16>
    %c0_5 = arith.constant 0 : index
    %c0_6 = arith.constant 0 : index
    %6 = vector.load %arg4[%c0_5, %c0_6] : memref<1152x128xbf16, #tpu.memory_space<vmem>>, vector<128x128xbf16>
    %cst_7 = arith.constant dense<0.000000e+00> : vector<256x128xf32>
    %7 = tpu.matmul %5, %6, %cst_7 {dimension_numbers = #tpu.dot_dimension_numbers<[1], [0], [0], [1], [0, 0, 1, 1], [], []>} : vector<256x128xbf16>, vector<128x128xbf16>, vector<256x128xf32> -> vector<256x128xf32>
    %8 = arith.addf %1, %7 : vector<256x128xf32>
    %c0_8 = arith.constant 0 : index
    %c0_9 = arith.constant 0 : index
    %c1 = arith.constant 1 : index
    %c0_10 = arith.constant 0 : index
    %9 = vector.load %arg2[%c0_8, %c0_9, %c1, %c0_10] : memref<1x18x18x128xf32, #tpu.memory_space<vmem>>, vector<1x16x16x128xf32>
    %10 = vector.shape_cast %9 : vector<1x16x16x128xf32> to vector<16x16x128xf32>
    %11 = vector.shape_cast %10 : vector<16x16x128xf32> to vector<256x128xf32>
    %12 = arith.truncf %11 : vector<256x128xf32> to vector<256x128xbf16>
    %c128 = arith.constant 128 : index
    %c0_11 = arith.constant 0 : index
    %13 = vector.load %arg4[%c128, %c0_11] : memref<1152x128xbf16, #tpu.memory_space<vmem>>, vector<128x128xbf16>
    %cst_12 = arith.constant dense<0.000000e+00> : vector<256x128xf32>
    %14 = tpu.matmul %12, %13, %cst_12 {dimension_numbers = #tpu.dot_dimension_numbers<[1], [0], [0], [1], [0, 0, 1, 1], [], []>} : vector<256x128xbf16>, vector<128x128xbf16>, vector<256x128xf32> -> vector<256x128xf32>
    %15 = arith.addf %8, %14 : vector<256x128xf32>
    %c0_13 = arith.constant 0 : index
    %c0_14 = arith.constant 0 : index
    %c2 = arith.constant 2 : index
    %c0_15 = arith.constant 0 : index
    %16 = vector.load %arg2[%c0_13, %c0_14, %c2, %c0_15] : memref<1x18x18x128xf32, #tpu.memory_space<vmem>>, vector<1x16x16x128xf32>
    %17 = vector.shape_cast %16 : vector<1x16x16x128xf32> to vector<16x16x128xf32>
    %18 = vector.shape_cast %17 : vector<16x16x128xf32> to vector<256x128xf32>
    %19 = arith.truncf %18 : vector<256x128xf32> to vector<256x128xbf16>
    %c256 = arith.constant 256 : index
    %c0_16 = arith.constant 0 : index
    %20 = vector.load %arg4[%c256, %c0_16] : memref<1152x128xbf16, #tpu.memory_space<vmem>>, vector<128x128xbf16>
    %cst_17 = arith.constant dense<0.000000e+00> : vector<256x128xf32>
    %21 = tpu.matmul %19, %20, %cst_17 {dimension_numbers = #tpu.dot_dimension_numbers<[1], [0], [0], [1], [0, 0, 1, 1], [], []>} : vector<256x128xbf16>, vector<128x128xbf16>, vector<256x128xf32> -> vector<256x128xf32>
    %22 = arith.addf %15, %21 : vector<256x128xf32>
    %c0_18 = arith.constant 0 : index
    %c1_19 = arith.constant 1 : index
    %c0_20 = arith.constant 0 : index
    %c0_21 = arith.constant 0 : index
    %23 = vector.load %arg2[%c0_18, %c1_19, %c0_20, %c0_21] : memref<1x18x18x128xf32, #tpu.memory_space<vmem>>, vector<1x16x16x128xf32>
    %24 = vector.shape_cast %23 : vector<1x16x16x128xf32> to vector<16x16x128xf32>
    %25 = vector.shape_cast %24 : vector<16x16x128xf32> to vector<256x128xf32>
    %26 = arith.truncf %25 : vector<256x128xf32> to vector<256x128xbf16>
    %c384 = arith.constant 384 : index
    %c0_22 = arith.constant 0 : index
    %27 = vector.load %arg4[%c384, %c0_22] : memref<1152x128xbf16, #tpu.memory_space<vmem>>, vector<128x128xbf16>
    %cst_23 = arith.constant dense<0.000000e+00> : vector<256x128xf32>
    %28 = tpu.matmul %26, %27, %cst_23 {dimension_numbers = #tpu.dot_dimension_numbers<[1], [0], [0], [1], [0, 0, 1, 1], [], []>} : vector<256x128xbf16>, vector<128x128xbf16>, vector<256x128xf32> -> vector<256x128xf32>
    %29 = arith.addf %22, %28 : vector<256x128xf32>
    %c0_24 = arith.constant 0 : index
    %c1_25 = arith.constant 1 : index
    %c1_26 = arith.constant 1 : index
    %c0_27 = arith.constant 0 : index
    %30 = vector.load %arg2[%c0_24, %c1_25, %c1_26, %c0_27] : memref<1x18x18x128xf32, #tpu.memory_space<vmem>>, vector<1x16x16x128xf32>
    %31 = vector.shape_cast %30 : vector<1x16x16x128xf32> to vector<16x16x128xf32>
    %32 = vector.shape_cast %31 : vector<16x16x128xf32> to vector<256x128xf32>
    %33 = arith.truncf %32 : vector<256x128xf32> to vector<256x128xbf16>
    %c512 = arith.constant 512 : index
    %c0_28 = arith.constant 0 : index
    %34 = vector.load %arg4[%c512, %c0_28] : memref<1152x128xbf16, #tpu.memory_space<vmem>>, vector<128x128xbf16>
    %cst_29 = arith.constant dense<0.000000e+00> : vector<256x128xf32>
    %35 = tpu.matmul %33, %34, %cst_29 {dimension_numbers = #tpu.dot_dimension_numbers<[1], [0], [0], [1], [0, 0, 1, 1], [], []>} : vector<256x128xbf16>, vector<128x128xbf16>, vector<256x128xf32> -> vector<256x128xf32>
    %36 = arith.addf %29, %35 : vector<256x128xf32>
    %c0_30 = arith.constant 0 : index
    %c1_31 = arith.constant 1 : index
    %c2_32 = arith.constant 2 : index
    %c0_33 = arith.constant 0 : index
    %37 = vector.load %arg2[%c0_30, %c1_31, %c2_32, %c0_33] : memref<1x18x18x128xf32, #tpu.memory_space<vmem>>, vector<1x16x16x128xf32>
    %38 = vector.shape_cast %37 : vector<1x16x16x128xf32> to vector<16x16x128xf32>
    %39 = vector.shape_cast %38 : vector<16x16x128xf32> to vector<256x128xf32>
    %40 = arith.truncf %39 : vector<256x128xf32> to vector<256x128xbf16>
    %c640 = arith.constant 640 : index
    %c0_34 = arith.constant 0 : index
    %41 = vector.load %arg4[%c640, %c0_34] : memref<1152x128xbf16, #tpu.memory_space<vmem>>, vector<128x128xbf16>
    %cst_35 = arith.constant dense<0.000000e+00> : vector<256x128xf32>
    %42 = tpu.matmul %40, %41, %cst_35 {dimension_numbers = #tpu.dot_dimension_numbers<[1], [0], [0], [1], [0, 0, 1, 1], [], []>} : vector<256x128xbf16>, vector<128x128xbf16>, vector<256x128xf32> -> vector<256x128xf32>
    %43 = arith.addf %36, %42 : vector<256x128xf32>
    %c0_36 = arith.constant 0 : index
    %c2_37 = arith.constant 2 : index
    %c0_38 = arith.constant 0 : index
    %c0_39 = arith.constant 0 : index
    %44 = vector.load %arg2[%c0_36, %c2_37, %c0_38, %c0_39] : memref<1x18x18x128xf32, #tpu.memory_space<vmem>>, vector<1x16x16x128xf32>
    %45 = vector.shape_cast %44 : vector<1x16x16x128xf32> to vector<16x16x128xf32>
    %46 = vector.shape_cast %45 : vector<16x16x128xf32> to vector<256x128xf32>
    %47 = arith.truncf %46 : vector<256x128xf32> to vector<256x128xbf16>
    %c768 = arith.constant 768 : index
    %c0_40 = arith.constant 0 : index
    %48 = vector.load %arg4[%c768, %c0_40] : memref<1152x128xbf16, #tpu.memory_space<vmem>>, vector<128x128xbf16>
    %cst_41 = arith.constant dense<0.000000e+00> : vector<256x128xf32>
    %49 = tpu.matmul %47, %48, %cst_41 {dimension_numbers = #tpu.dot_dimension_numbers<[1], [0], [0], [1], [0, 0, 1, 1], [], []>} : vector<256x128xbf16>, vector<128x128xbf16>, vector<256x128xf32> -> vector<256x128xf32>
    %50 = arith.addf %43, %49 : vector<256x128xf32>
    %c0_42 = arith.constant 0 : index
    %c2_43 = arith.constant 2 : index
    %c1_44 = arith.constant 1 : index
    %c0_45 = arith.constant 0 : index
    %51 = vector.load %arg2[%c0_42, %c2_43, %c1_44, %c0_45] : memref<1x18x18x128xf32, #tpu.memory_space<vmem>>, vector<1x16x16x128xf32>
    %52 = vector.shape_cast %51 : vector<1x16x16x128xf32> to vector<16x16x128xf32>
    %53 = vector.shape_cast %52 : vector<16x16x128xf32> to vector<256x128xf32>
    %54 = arith.truncf %53 : vector<256x128xf32> to vector<256x128xbf16>
    %c896 = arith.constant 896 : index
    %c0_46 = arith.constant 0 : index
    %55 = vector.load %arg4[%c896, %c0_46] : memref<1152x128xbf16, #tpu.memory_space<vmem>>, vector<128x128xbf16>
    %cst_47 = arith.constant dense<0.000000e+00> : vector<256x128xf32>
    %56 = tpu.matmul %54, %55, %cst_47 {dimension_numbers = #tpu.dot_dimension_numbers<[1], [0], [0], [1], [0, 0, 1, 1], [], []>} : vector<256x128xbf16>, vector<128x128xbf16>, vector<256x128xf32> -> vector<256x128xf32>
    %57 = arith.addf %50, %56 : vector<256x128xf32>
    %c0_48 = arith.constant 0 : index
    %c2_49 = arith.constant 2 : index
    %c2_50 = arith.constant 2 : index
    %c0_51 = arith.constant 0 : index
    %58 = vector.load %arg2[%c0_48, %c2_49, %c2_50, %c0_51] : memref<1x18x18x128xf32, #tpu.memory_space<vmem>>, vector<1x16x16x128xf32>
    %59 = vector.shape_cast %58 : vector<1x16x16x128xf32> to vector<16x16x128xf32>
    %60 = vector.shape_cast %59 : vector<16x16x128xf32> to vector<256x128xf32>
    %61 = arith.truncf %60 : vector<256x128xf32> to vector<256x128xbf16>
    %c1024 = arith.constant 1024 : index
    %c0_52 = arith.constant 0 : index
    %62 = vector.load %arg4[%c1024, %c0_52] : memref<1152x128xbf16, #tpu.memory_space<vmem>>, vector<128x128xbf16>
    %cst_53 = arith.constant dense<0.000000e+00> : vector<256x128xf32>
    %63 = tpu.matmul %61, %62, %cst_53 {dimension_numbers = #tpu.dot_dimension_numbers<[1], [0], [0], [1], [0, 0, 1, 1], [], []>} : vector<256x128xbf16>, vector<128x128xbf16>, vector<256x128xf32> -> vector<256x128xf32>
    %64 = arith.addf %57, %63 : vector<256x128xf32>
    %65 = vector.broadcast %0 : vector<1x128xf32> to vector<256x128xf32>
    %66 = arith.addf %64, %65 : vector<256x128xf32>
    %cst_54 = arith.constant 0.000000e+00 : f32
    %67 = vector.broadcast %cst_54 : f32 to vector<256x128xf32>
    %68 = arith.maximumf %66, %67 : vector<256x128xf32>
    %c0_55 = arith.constant 0 : index
    %c0_56 = arith.constant 0 : index
    %c0_57 = arith.constant 0 : index
    %69 = vector.load %arg6[%c0_55, %c0_56, %c0_57] : memref<1x256x128xf32, #tpu.memory_space<vmem>>, vector<1x256x128xf32>
    %70 = vector.shape_cast %69 : vector<1x256x128xf32> to vector<256x128xf32>
    %71 = vector.shape_cast %68 : vector<256x128xf32> to vector<1x256x128xf32>
    tpu.vector_store %arg6[%c0_55, %c0_56, %c0_57], %71 {strides = array<i32>} : memref<1x256x128xf32, #tpu.memory_space<vmem>>, vector<1x256x128xf32>,
    %cst_58 = arith.constant dense<0.000000e+00> : vector<128xf32>
    %72 = vector.multi_reduction <add>, %68, %cst_58 [0] : vector<256x128xf32> to vector<128xf32>
    %73 = vector.shape_cast %72 : vector<128xf32> to vector<1x128xf32>
    %c0_59 = arith.constant 0 : index
    %c0_60 = arith.constant 0 : index
    %c0_61 = arith.constant 0 : index
    %74 = vector.load %arg7[%c0_59, %c0_60, %c0_61] : memref<1x1x128xf32, #tpu.memory_space<vmem>>, vector<1x1x128xf32>
    %75 = vector.shape_cast %74 : vector<1x1x128xf32> to vector<1x128xf32>
    %76 = vector.shape_cast %73 : vector<1x128xf32> to vector<1x1x128xf32>
    tpu.vector_store %arg7[%c0_59, %c0_60, %c0_61], %76 {strides = array<i32>} : memref<1x1x128xf32, #tpu.memory_space<vmem>>, vector<1x1x128xf32>,
    %77 = arith.mulf %68, %68 : vector<256x128xf32>
    %cst_62 = arith.constant dense<0.000000e+00> : vector<128xf32>
    %78 = vector.multi_reduction <add>, %77, %cst_62 [0] : vector<256x128xf32> to vector<128xf32>
    %79 = vector.shape_cast %78 : vector<128xf32> to vector<1x128xf32>
    %c0_63 = arith.constant 0 : index
    %c0_64 = arith.constant 0 : index
    %c0_65 = arith.constant 0 : index
    %80 = vector.load %arg8[%c0_63, %c0_64, %c0_65] : memref<1x1x128xf32, #tpu.memory_space<vmem>>, vector<1x1x128xf32>
    %81 = vector.shape_cast %80 : vector<1x1x128xf32> to vector<1x128xf32>
    %82 = vector.shape_cast %79 : vector<1x128xf32> to vector<1x1x128xf32>
    tpu.vector_store %arg8[%c0_63, %c0_64, %c0_65], %82 {strides = array<i32>} : memref<1x1x128xf32, #tpu.memory_space<vmem>>, vector<1x1x128xf32>,
    return
  }
  func.func @transform_0(%arg0: i32, %arg1: i32) -> (i32, i32, i32, i32) {
    %c0_i32 = arith.constant 0 : i32
    %c0_i32_0 = arith.constant 0 : i32
    %c0_i32_1 = arith.constant 0 : i32
    %c0_i32_2 = arith.constant 0 : i32
    return %arg0, %c0_i32, %c0_i32_0, %c0_i32_1 : i32, i32, i32, i32
  }
  func.func @transform_1(%arg0: i32, %arg1: i32) -> (i32, i32) {
    %c0_i32 = arith.constant 0 : i32
    %c0_i32_0 = arith.constant 0 : i32
    %c0_i32_1 = arith.constant 0 : i32
    return %c0_i32, %c0_i32_0 : i32, i32
  }
  func.func @transform_2(%arg0: i32, %arg1: i32) -> (i32, i32) {
    %c0_i32 = arith.constant 0 : i32
    %c0_i32_0 = arith.constant 0 : i32
    return %c0_i32, %arg1 : i32, i32
  }
  func.func @transform_3(%arg0: i32, %arg1: i32) -> (i32, i32) {
    %c0_i32 = arith.constant 0 : i32
    %c0_i32_0 = arith.constant 0 : i32
    return %c0_i32, %arg1 : i32, i32
  }
  func.func @transform_4(%arg0: i32, %arg1: i32) -> (i32, i32, i32) {
    %c0_i32 = arith.constant 0 : i32
    %c0_i32_0 = arith.constant 0 : i32
    return %arg0, %c0_i32, %arg1 : i32, i32, i32
  }
  func.func @transform_5(%arg0: i32, %arg1: i32) -> (i32, i32, i32) {
    %c0_i32 = arith.constant 0 : i32
    %c0_i32_0 = arith.constant 0 : i32
    return %arg0, %c0_i32, %arg1 : i32, i32, i32
  }
  func.func @transform_6(%arg0: i32, %arg1: i32) -> (i32, i32, i32) {
    %c0_i32 = arith.constant 0 : i32
    %c0_i32_0 = arith.constant 0 : i32
    return %arg0, %c0_i32, %arg1 : i32, i32, i32
  }
}

</mosaic_0001>

<llo_original>
// kernel: tpu_custom_call.1
$region0: #{tpu_custom_call.1}
  #allocation0 [shape = 'u32[]', space=smem, size = 0x4, offset = 0x4, fixed_abs, tag = 'smem constant byte address 0x4 - core index']
  #allocation1 [shape = 'u32[72,128]{1,0:T(1,128)}', space=vmem, size = 0x9000, scoped, tag = 'internal scratch']
  %s0 = inlined_call_operand.vmem [shape: f32[2,18,18,128], index: 0, kind: input, shape index: {}]
  %s1 = inlined_call_operand.vmem [shape: f32[2,128], index: 1, kind: input, shape index: {}]
  %s2 = inlined_call_operand.vmem [shape: bf16[1152,128], index: 2, kind: input, shape index: {}]
  %s3 = inlined_call_operand.vmem [shape: f32[1,128], index: 3, kind: input, shape index: {}]
  %s4 = inlined_call_operand.hbm [shape: f32[2,256,128], index: 4, kind: output, shape index: {0}]
  %s5 = inlined_call_operand.hbm [shape: f32[2,1,128], index: 5, kind: output, shape index: {1}]
  %s6 = inlined_call_operand.hbm [shape: f32[2,1,128], index: 6, kind: output, shape index: {2}]
  %7 = xla_tuple %s4, %s5, %s6
  %s8 = sld [smem:[#allocation0]]
  $region65: #{tpu_custom_call.1} parent=0
    _
  %s10 = ssub.s32 1, %s8
  %s11 = scalar_select 0, %s10, %s8
  $region1: #{tpu_custom_call.1} parent=0
    #allocation2 [shape = 'u8[262144]{0}', space=vmem, size = 0x40000, scoped, tag = 'output window, operand 0']
    #allocation3 [shape = 's32[2]{0}', space=sflag, size = 0x8, scoped, tag = 'scoped memory for tpu_custom_call.1']
    #allocation4 [shape = 'u8[1024]{0}', space=vmem, size = 0x400, scoped, tag = 'output window, operand 1']
    #allocation5 [shape = 's32[2]{0}', space=sflag, size = 0x8, scoped, tag = 'scoped memory for tpu_custom_call.1']
    #allocation6 [shape = 'u8[1024]{0}', space=vmem, size = 0x400, scoped, tag = 'output window, operand 2']
    %12 = vsyncpa [#allocation3], 0
    %s13 = scalar_lea.sflag [#allocation3], 1
    %14 = vsyncpa %s13, 0
    %15 = vsyncpa [#allocation5], 0
    %s16 = scalar_lea.sflag [#allocation5], 1
    %17 = vsyncpa %s16, 0
    loop: start=0, step=1, limit=4
    $region2: #{tpu_custom_call.1} parent=1 // loop_pre_header
      _
    $region3: #{tpu_custom_call.1} parent=1 // loop_header
      %s19 = sphi 0, %s23
      %p20 = scmp.ge.s32.totalorder %s19, 4
      %s26 = sphi 0, %s38
      %s27 = sphi 0, %s34
      %s28 = sphi 0, %s26
      %s29 = sphi 0, %s27
      %s30 = sphi 0, %s28
      %s31 = sphi 0, %s29
      %s41 = sphi 0, %s43
      %s44 = sphi 0, %s41
      %s45 = sphi 0, %s44
      %s61 = sphi 0, %s45
      %s65 = sphi 0, %s65
      %s67 = sphi 0, %s65
      %s68 = sphi 0, %s67
      %s82 = sphi 0, %s68
      %s88 = sphi 0, %s90
      %s91 = sphi 0, %s88
      %s92 = sphi 0, %s91
      %s108 = sphi 0, %s92
      %s114 = sphi 0, %s116
      %s117 = sphi 0, %s114
      %s118 = sphi 0, %s117
      %s134 = sphi 0, %s118
      %s142 = sphi 0, %s144
      %s145 = sphi 0, %s142
      %s146 = sphi 0, %s145
      %s162 = sphi 0, %s146
      %s170 = sphi 0, %s172
      %s173 = sphi 0, %s170
      %s174 = sphi 0, %s173
      %s190 = sphi 0, %s174
      %s198 = sphi 0, %s200
      %s201 = sphi 0, %s198
      %s202 = sphi 0, %s201
      %s218 = sphi 0, %s202
    $region4: #{tpu_custom_call.1} parent=1 // loop_header_branch
      %22 = sbr.rel (%p20) target = $region8
    $region5: #{tpu_custom_call.1} parent=1 // loop_body
      %s24 = ssub.s32 %s19, 1
      %s25 = ssub.s32 %s19, 2
      %s32 = sadd.s32 1, %s27
      %p33 = scmp.ge.s32.totalorder %s32, 1
      %s34 = scalar_select %p33, 0, %s32
      %s35 = sadd.s32 1, %s26
      %s36 = scalar_select %p33, %s35, %s26
      %p37 = scmp.ge.s32.totalorder %s36, 2
      %s38 = scalar_select %p37, 0, %s36
      %s39 = ssub.s32 %s26, %s38
      %p40 = scmp.eq.s32.totalorder %s39, 0
      %s42 = sadd.s32 %s41, 1
      %s43 = scalar_select %p40, %s41, %s42
      %p46 = pneg %p40
      %p47 = scmp.eq.s32.totalorder %s19, 1
      %p48 = por %p46, %p47
      %p49 = scmp.ne.s32.totalorder %s41, %s44
      %p50 = scmp.eq.s32.totalorder %s19, 0
      %p51 = por %p49, %p50
      %p52 = scmp.ne.s32.totalorder %s41, %s44
      %p53 = scmp.eq.s32.totalorder %s24, 1
      %p54 = por %p52, %p53
      %p55 = scmp.ne.s32.totalorder %s44, %s45
      %p56 = scmp.eq.s32.totalorder %s24, 0
      %p57 = por %p55, %p56
      %p58 = scmp.ne.s32.totalorder %s44, %s45
      %p59 = scmp.eq.s32.totalorder %s25, 1
      %p60 = por %p58, %p59
      %p62 = scmp.ne.s32.totalorder %s45, %s61
      %p63 = scmp.eq.s32.totalorder %s25, 0
      %p64 = por %p62, %p63
      %s66 = sadd.s32 %s65, 1
      %p69 = scmp.eq.s32.totalorder %s19, 1
      %p70 = scmp.ne.s32.totalorder %s65, %s67
      %p71 = scmp.eq.s32.totalorder %s19, 0
      %p72 = por %p70, %p71
      %p73 = scmp.ne.s32.totalorder %s65, %s67
      %p74 = scmp.eq.s32.totalorder %s24, 1
      %p75 = por %p73, %p74
      %p76 = scmp.ne.s32.totalorder %s67, %s68
      %p77 = scmp.eq.s32.totalorder %s24, 0
      %p78 = por %p76, %p77
      %p79 = scmp.ne.s32.totalorder %s67, %s68
      %p80 = scmp.eq.s32.totalorder %s25, 1
      %p81 = por %p79, %p80
      %p83 = scmp.ne.s32.totalorder %s68, %s82
      %p84 = scmp.eq.s32.totalorder %s25, 0
      %p85 = por %p83, %p84
      %s86 = ssub.s32 %s27, %s34
      %p87 = scmp.eq.s32.totalorder %s86, 0
      %s89 = sadd.s32 %s88, 1
      %s90 = scalar_select %p87, %s88, %s89
      %p93 = pneg %p87
      %p94 = scmp.eq.s32.totalorder %s19, 1
      %p95 = por %p93, %p94
      %p96 = scmp.ne.s32.totalorder %s88, %s91
      %p97 = scmp.eq.s32.totalorder %s19, 0
      %p98 = por %p96, %p97
      %p99 = scmp.ne.s32.totalorder %s88, %s91
      %p100 = scmp.eq.s32.totalorder %s24, 1
      %p101 = por %p99, %p100
      %p102 = scmp.ne.s32.totalorder %s91, %s92
      %p103 = scmp.eq.s32.totalorder %s24, 0
      %p104 = por %p102, %p103
      %p105 = scmp.ne.s32.totalorder %s91, %s92
      %p106 = scmp.eq.s32.totalorder %s25, 1
      %p107 = por %p105, %p106
      %p109 = scmp.ne.s32.totalorder %s92, %s108
      %p110 = scmp.eq.s32.totalorder %s25, 0
      %p111 = por %p109, %p110
      %s112 = ssub.s32 %s27, %s34
      %p113 = scmp.eq.s32.totalorder %s112, 0
      %s115 = sadd.s32 %s114, 1
      %s116 = scalar_select %p113, %s114, %s115
      %p119 = pneg %p113
      %p120 = scmp.eq.s32.totalorder %s19, 1
      %p121 = por %p119, %p120
      %p122 = scmp.ne.s32.totalorder %s114, %s117
      %p123 = scmp.eq.s32.totalorder %s19, 0
      %p124 = por %p122, %p123
      %p125 = scmp.ne.s32.totalorder %s114, %s117
      %p126 = scmp.eq.s32.totalorder %s24, 1
      %p127 = por %p125, %p126
      %p128 = scmp.ne.s32.totalorder %s117, %s118
      %p129 = scmp.eq.s32.totalorder %s24, 0
      %p130 = por %p128, %p129
      %p131 = scmp.ne.s32.totalorder %s117, %s118
      %p132 = scmp.eq.s32.totalorder %s25, 1
      %p133 = por %p131, %p132
      %p135 = scmp.ne.s32.totalorder %s118, %s134
      %p136 = scmp.eq.s32.totalorder %s25, 0
      %p137 = por %p135, %p136
      %s138 = ssub.s32 %s26, %s38
      %s139 = ssub.s32 %s27, %s34
      %s140 = sor.u32 %s138, %s139
      %p141 = scmp.eq.s32.totalorder %s140, 0
      %s143 = sadd.s32 %s142, 1
      %s144 = scalar_select %p141, %s142, %s143
      %p147 = pneg %p141
      %p148 = scmp.eq.s32.totalorder %s19, 1
      %p149 = por %p147, %p148
      %p150 = scmp.ne.s32.totalorder %s142, %s145
      %p151 = scmp.eq.s32.totalorder %s19, 0
      %p152 = por %p150, %p151
      %p153 = scmp.ne.s32.totalorder %s142, %s145
      %p154 = scmp.eq.s32.totalorder %s24, 1
      %p155 = por %p153, %p154
      %p156 = scmp.ne.s32.totalorder %s145, %s146
      %p157 = scmp.eq.s32.totalorder %s24, 0
      %p158 = por %p156, %p157
      %p159 = scmp.ne.s32.totalorder %s145, %s146
      %p160 = scmp.eq.s32.totalorder %s25, 1
      %p161 = por %p159, %p160
      %p163 = scmp.ne.s32.totalorder %s146, %s162
      %p164 = scmp.eq.s32.totalorder %s25, 0
      %p165 = por %p163, %p164
      %s166 = ssub.s32 %s26, %s38
      %s167 = ssub.s32 %s27, %s34
      %s168 = sor.u32 %s166, %s167
      %p169 = scmp.eq.s32.totalorder %s168, 0
      %s171 = sadd.s32 %s170, 1
      %s172 = scalar_select %p169, %s170, %s171
      %p175 = pneg %p169
      %p176 = scmp.eq.s32.totalorder %s19, 1
      %p177 = por %p175, %p176
      %p178 = scmp.ne.s32.totalorder %s170, %s173
      %p179 = scmp.eq.s32.totalorder %s19, 0
      %p180 = por %p178, %p179
      %p181 = scmp.ne.s32.totalorder %s170, %s173
      %p182 = scmp.eq.s32.totalorder %s24, 1
      %p183 = por %p181, %p182
      %p184 = scmp.ne.s32.totalorder %s173, %s174
      %p185 = scmp.eq.s32.totalorder %s24, 0
      %p186 = por %p184, %p185
      %p187 = scmp.ne.s32.totalorder %s173, %s174
      %p188 = scmp.eq.s32.totalorder %s25, 1
      %p189 = por %p187, %p188
      %p191 = scmp.ne.s32.totalorder %s174, %s190
      %p192 = scmp.eq.s32.totalorder %s25, 0
      %p193 = por %p191, %p192
      %s194 = ssub.s32 %s26, %s38
      %s195 = ssub.s32 %s27, %s34
      %s196 = sor.u32 %s194, %s195
      %p197 = scmp.eq.s32.totalorder %s196, 0
      %s199 = sadd.s32 %s198, 1
      %s200 = scalar_select %p197, %s198, %s199
      %p203 = pneg %p197
      %p204 = scmp.eq.s32.totalorder %s19, 1
      %p205 = por %p203, %p204
      %p206 = scmp.ne.s32.totalorder %s198, %s201
      %p207 = scmp.eq.s32.totalorder %s19, 0
      %p208 = por %p206, %p207
      %p209 = scmp.ne.s32.totalorder %s198, %s201
      %p210 = scmp.eq.s32.totalorder %s24, 1
      %p211 = por %p209, %p210
      %p212 = scmp.ne.s32.totalorder %s201, %s202
      %p213 = scmp.eq.s32.totalorder %s24, 0
      %p214 = por %p212, %p213
      %p215 = scmp.ne.s32.totalorder %s201, %s202
      %p216 = scmp.eq.s32.totalorder %s25, 1
      %p217 = por %p215, %p216
      %p219 = scmp.ne.s32.totalorder %s202, %s218
      %p220 = scmp.eq.s32.totalorder %s25, 0
      %p221 = por %p219, %p220
      %p222 = scmp.le.s32.totalorder 1, %s19
      %p223 = scmp.lt.s32.totalorder %s19, 3
      %p224 = pnand %p222, %p223
      %p225 = pneg %p224
      // Predicated region
      $region9: #{tpu_custom_call.1} parent=5 // pred_check
        _
      $region10: #{tpu_custom_call.1} parent=5 // pred_check_branch
        %227 = sbr.rel (%p224) target = $region12
      $region11: #{tpu_custom_call.1} parent=5 // pred_region
        %s228 = ssub.s32 %s19, 1
        // Predicated region
        $region13: #{tpu_custom_call.1} parent=11 // pred_check
          %p229 = pneg %p78
        $region14: #{tpu_custom_call.1} parent=11 // pred_check_branch
          %231 = sbr.rel (%p229) target = $region16
        $region15: #{tpu_custom_call.1} parent=11 // pred_region
          _
        $region16: #{tpu_custom_call.1} parent=11 // pred_fallthru
          _
        // Predicated region
        $region17: #{tpu_custom_call.1} parent=11 // pred_check
          %p232 = pneg %p104
        $region18: #{tpu_custom_call.1} parent=11 // pred_check_branch
          %234 = sbr.rel (%p232) target = $region20
        $region19: #{tpu_custom_call.1} parent=11 // pred_region
          %p235 = scmp.lt.s32.totalorder %s29, 0
          %s236 = scalar_select %p235, %s29, 0
          %s237 = smul.addr %s236, 4
          %s238 = scalar_lea.vmem %s2, %s237
        $region20: #{tpu_custom_call.1} parent=11 // pred_fallthru
          _
        // Predicated region
        $region21: #{tpu_custom_call.1} parent=11 // pred_check
          %p239 = pneg %p130
        $region22: #{tpu_custom_call.1} parent=11 // pred_check_branch
          %241 = sbr.rel (%p239) target = $region24
        $region23: #{tpu_custom_call.1} parent=11 // pred_region
          %p242 = scmp.lt.s32.totalorder %s29, 0
          %s243 = scalar_select %p242, %s29, 0
          %s244 = scalar_lea.vmem %s3, %s243
        $region24: #{tpu_custom_call.1} parent=11 // pred_fallthru
          _
      $region12: #{tpu_custom_call.1} parent=5 // pred_fallthru
        _
      %p245 = scmp.lt.s32.totalorder %s19, 2
      // Predicated region
      $region25: #{tpu_custom_call.1} parent=5 // pred_check
        %p246 = pneg %p245
      $region26: #{tpu_custom_call.1} parent=5 // pred_check_branch
        %248 = sbr.rel (%p246) target = $region28
      $region27: #{tpu_custom_call.1} parent=5 // pred_region
        // Predicated region
        $region29: #{tpu_custom_call.1} parent=27 // pred_check
          %p249 = pneg %p51
        $region30: #{tpu_custom_call.1} parent=27 // pred_check_branch
          %251 = sbr.rel (%p249) target = $region32
        $region31: #{tpu_custom_call.1} parent=27 // pred_region
          %p252 = scmp.lt.s32.totalorder %s26, 1
          %s253 = scalar_select %p252, %s26, 1
          %s254 = smul.addr %s253, 54
          %s255 = smul.addr %s254, 8
          %s256 = scalar_lea.vmem %s0, %s255
        $region32: #{tpu_custom_call.1} parent=27 // pred_fallthru
          _
      $region28: #{tpu_custom_call.1} parent=5 // pred_fallthru
        _
      %p257 = scmp.le.s32.totalorder 1, %s19
      %p258 = scmp.lt.s32.totalorder %s19, 3
      %p259 = pnand %p257, %p258
      %p260 = pneg %p259
      // Predicated region
      $region33: #{tpu_custom_call.1} parent=5 // pred_check
        _
      $region34: #{tpu_custom_call.1} parent=5 // pred_check_branch
        %262 = sbr.rel (%p259) target = $region36
      $region35: #{tpu_custom_call.1} parent=5 // pred_region
        %s263 = ssub.s32 %s19, 1
        %p264 = scmp.lt.s32.totalorder %s28, 1
        %s265 = scalar_select %p264, %s28, 1
        %s266 = smul.addr %s265, 54
        %s267 = smul.addr %s266, 8
        %s268 = scalar_lea.vmem %s0, %s267
        %p269 = pneg %p57
        %p270 = pneg %p54
        %p271 = pneg %p78
        %p272 = pneg %p75
        %p273 = scmp.lt.s32.totalorder %s29, 0
        %s274 = scalar_select %p273, %s29, 0
        %s275 = smul.addr %s274, 4
        %s276 = scalar_lea.vmem %s2, %s275
        %p277 = pneg %p104
        %p278 = pneg %p101
        %p279 = scmp.lt.s32.totalorder %s29, 0
        %s280 = scalar_select %p279, %s29, 0
        %s281 = scalar_lea.vmem %s3, %s280
        %p282 = pneg %p130
        %p283 = pneg %p127
        %p284 = pneg %p158
        %p285 = pneg %p155
        %s286 = sand.u32 %s145, 1
        %s287 = scalar_lea.sflag [#allocation3], %s286
        %s288 = sand.u32 %s145, 1
        %s289 = smul.addr %s288, 256
        %s290 = scalar_lea.vmem [#allocation2], %s289
        %p291 = pneg %p186
        %p292 = pneg %p183
        %s293 = sand.u32 %s24, 1
        %s294 = scalar_lea.sflag [#allocation5], %s293
        %s295 = sand.u32 %s173, 1
        %s296 = scalar_lea.vmem [#allocation4], %s295
        %p297 = pneg %p214
        %p298 = pneg %p211
        %s299 = sand.u32 %s24, 1
        %s300 = scalar_lea.sflag [#allocation5], %s299
        %s301 = sand.u32 %s201, 1
        %s302 = scalar_lea.vmem [#allocation6], %s301
        %p303 = scmp.lt.s32.totalorder %s28, 1
        %s304 = scalar_select %p303, %s28, 1
        %s305 = smul.addr %s304, 54
        %s306 = smul.addr %s305, 8
        %s307 = scalar_lea.vmem %s0, %s306
        %p308 = scmp.lt.s32.totalorder %s29, 0
        %s309 = scalar_select %p308, %s29, 0
        %s310 = smul.addr %s309, 4
        %s311 = scalar_lea.vmem %s2, %s310
        %p312 = scmp.lt.s32.totalorder %s29, 0
        %s313 = scalar_select %p312, %s29, 0
        %s314 = scalar_lea.vmem %s3, %s313
        %v315 = vld [vmem:[%s314] sm:$0x1]
        %v316 = vld [vmem:[%s307] sm:$0xff]
        %v317 = vld [vmem:[%s307 + $0x8] sm:$0xff]
        %v318 = vld [vmem:[%s307 + $0x18] sm:$0xff]
        %v319 = vld [vmem:[%s307 + $0x20] sm:$0xff]
        %v320 = vld [vmem:[%s307 + $0x30] sm:$0xff]
        %v321 = vld [vmem:[%s307 + $0x38] sm:$0xff]
        %v322 = vld [vmem:[%s307 + $0x48] sm:$0xff]
        %v323 = vld [vmem:[%s307 + $0x50] sm:$0xff]
        %v324 = vld [vmem:[%s307 + $0x60] sm:$0xff]
        %v325 = vld [vmem:[%s307 + $0x68] sm:$0xff]
        %v326 = vld [vmem:[%s307 + $0x78] sm:$0xff]
        %v327 = vld [vmem:[%s307 + $0x80] sm:$0xff]
        %v328 = vld [vmem:[%s307 + $0x90] sm:$0xff]
        %v329 = vld [vmem:[%s307 + $0x98] sm:$0xff]
        %v330 = vld [vmem:[%s307 + $0xa8] sm:$0xff]
        %v331 = vld [vmem:[%s307 + $0xb0] sm:$0xff]
        %v332 = vld [vmem:[%s307 + $0xc0] sm:$0xff]
        %v333 = vld [vmem:[%s307 + $0xc8] sm:$0xff]
        %v334 = vld [vmem:[%s307 + $0xd8] sm:$0xff]
        %v335 = vld [vmem:[%s307 + $0xe0] sm:$0xff]
        %v336 = vld [vmem:[%s307 + $0xf0] sm:$0xff]
        %v337 = vld [vmem:[%s307 + $0xf8] sm:$0xff]
        %v338 = vld [vmem:[%s307 + $0x108] sm:$0xff]
        %v339 = vld [vmem:[%s307 + $0x110] sm:$0xff]
        %v340 = vld [vmem:[%s307 + $0x120] sm:$0xff]
        %v341 = vld [vmem:[%s307 + $0x128] sm:$0xff]
        %v342 = vld [vmem:[%s307 + $0x138] sm:$0xff]
        %v343 = vld [vmem:[%s307 + $0x140] sm:$0xff]
        %v344 = vld [vmem:[%s307 + $0x150] sm:$0xff]
        %v345 = vld [vmem:[%s307 + $0x158] sm:$0xff]
        %v346 = vld [vmem:[%s307 + $0x168] sm:$0xff]
        %v347 = vld [vmem:[%s307 + $0x170] sm:$0xff]
        %v348 = vpack.c.bf16 %v317, %v316
        %v349 = vpack.c.bf16 %v319, %v318
        %v350 = vpack.c.bf16 %v321, %v320
        %v351 = vpack.c.bf16 %v323, %v322
        %v352 = vpack.c.bf16 %v325, %v324
        %v353 = vpack.c.bf16 %v327, %v326
        %v354 = vpack.c.bf16 %v329, %v328
        %v355 = vpack.c.bf16 %v331, %v330
        %v356 = vpack.c.bf16 %v333, %v332
        %v357 = vpack.c.bf16 %v335, %v334
        %v358 = vpack.c.bf16 %v337, %v336
        %v359 = vpack.c.bf16 %v339, %v338
        %v360 = vpack.c.bf16 %v341, %v340
        %v361 = vpack.c.bf16 %v343, %v342
        %v362 = vpack.c.bf16 %v345, %v344
        %v363 = vpack.c.bf16 %v347, %v346
        %v364 = vld [vmem:[%s311] sm:$0xf]
        %v365 = vld [vmem:[%s311 + $0x4] sm:$0xf]
        %v366 = vld [vmem:[%s311 + $0x8] sm:$0xf]
        %v367 = vld [vmem:[%s311 + $0xc] sm:$0xf]
        %v368 = vld [vmem:[%s311 + $0x10] sm:$0xf]
        %v369 = vld [vmem:[%s311 + $0x14] sm:$0xf]
        %v370 = vld [vmem:[%s311 + $0x18] sm:$0xf]
        %v371 = vld [vmem:[%s311 + $0x1c] sm:$0xf]
        %v372 = vld [vmem:[%s311 + $0x20] sm:$0xf]
        %v373 = vld [vmem:[%s311 + $0x24] sm:$0xf]
        %v374 = vld [vmem:[%s311 + $0x28] sm:$0xf]
        %v375 = vld [vmem:[%s311 + $0x2c] sm:$0xf]
        %v376 = vld [vmem:[%s311 + $0x30] sm:$0xf]
        %v377 = vld [vmem:[%s311 + $0x34] sm:$0xf]
        %v378 = vld [vmem:[%s311 + $0x38] sm:$0xf]
        %v379 = vld [vmem:[%s311 + $0x3c] sm:$0xf]
        %v380 = vld [vmem:[%s307 + $0x1] sm:$0xff]
        %v381 = vld [vmem:[%s307 + $0x9] sm:$0xff]
        %v382 = vld [vmem:[%s307 + $0x19] sm:$0xff]
        %v383 = vld [vmem:[%s307 + $0x21] sm:$0xff]
        %v384 = vld [vmem:[%s307 + $0x31] sm:$0xff]
        %v385 = vld [vmem:[%s307 + $0x39] sm:$0xff]
        %v386 = vld [vmem:[%s307 + $0x49] sm:$0xff]
        %v387 = vld [vmem:[%s307 + $0x51] sm:$0xff]
        %v388 = vld [vmem:[%s307 + $0x61] sm:$0xff]
        %v389 = vld [vmem:[%s307 + $0x69] sm:$0xff]
        %v390 = vld [vmem:[%s307 + $0x79] sm:$0xff]
        %v391 = vld [vmem:[%s307 + $0x81] sm:$0xff]
        %v392 = vld [vmem:[%s307 + $0x91] sm:$0xff]
        %v393 = vld [vmem:[%s307 + $0x99] sm:$0xff]
        %v394 = vld [vmem:[%s307 + $0xa9] sm:$0xff]
        %v395 = vld [vmem:[%s307 + $0xb1] sm:$0xff]
        %v396 = vld [vmem:[%s307 + $0xc1] sm:$0xff]
        %v397 = vld [vmem:[%s307 + $0xc9] sm:$0xff]
        %v398 = vld [vmem:[%s307 + $0xd9] sm:$0xff]
        %v399 = vld [vmem:[%s307 + $0xe1] sm:$0xff]
        %v400 = vld [vmem:[%s307 + $0xf1] sm:$0xff]
        %v401 = vld [vmem:[%s307 + $0xf9] sm:$0xff]
        %v402 = vld [vmem:[%s307 + $0x109] sm:$0xff]
        %v403 = vld [vmem:[%s307 + $0x111] sm:$0xff]
        %v404 = vld [vmem:[%s307 + $0x121] sm:$0xff]
        %v405 = vld [vmem:[%s307 + $0x129] sm:$0xff]
        %v406 = vld [vmem:[%s307 + $0x139] sm:$0xff]
        %v407 = vld [vmem:[%s307 + $0x141] sm:$0xff]
        %v408 = vld [vmem:[%s307 + $0x151] sm:$0xff]
        %v409 = vld [vmem:[%s307 + $0x159] sm:$0xff]
        %v410 = vld [vmem:[%s307 + $0x169] sm:$0xff]
        %v411 = vld [vmem:[%s307 + $0x171] sm:$0xff]
        %v412 = vpack.c.bf16 %v381, %v380
        %v413 = vpack.c.bf16 %v383, %v382
        %v414 = vpack.c.bf16 %v385, %v384
        %v415 = vpack.c.bf16 %v387, %v386
        %v416 = vpack.c.bf16 %v389, %v388
        %v417 = vpack.c.bf16 %v391, %v390
        %v418 = vpack.c.bf16 %v393, %v392
        %v419 = vpack.c.bf16 %v395, %v394
        %v420 = vpack.c.bf16 %v397, %v396
        %v421 = vpack.c.bf16 %v399, %v398
        %v422 = vpack.c.bf16 %v401, %v400
        %v423 = vpack.c.bf16 %v403, %v402
        %v424 = vpack.c.bf16 %v405, %v404
        %v425 = vpack.c.bf16 %v407, %v406
        %v426 = vpack.c.bf16 %v409, %v408
        %v427 = vpack.c.bf16 %v411, %v410
        %v428 = vld [vmem:[%s311 + $0x40] sm:$0xf]
        %v429 = vld [vmem:[%s311 + $0x44] sm:$0xf]
        %v430 = vld [vmem:[%s311 + $0x48] sm:$0xf]
        %v431 = vld [vmem:[%s311 + $0x4c] sm:$0xf]
        %v432 = vld [vmem:[%s311 + $0x50] sm:$0xf]
        %v433 = vld [vmem:[%s311 + $0x54] sm:$0xf]
        %v434 = vld [vmem:[%s311 + $0x58] sm:$0xf]
        %v435 = vld [vmem:[%s311 + $0x5c] sm:$0xf]
        %v436 = vld [vmem:[%s311 + $0x60] sm:$0xf]
        %v437 = vld [vmem:[%s311 + $0x64] sm:$0xf]
        %v438 = vld [vmem:[%s311 + $0x68] sm:$0xf]
        %v439 = vld [vmem:[%s311 + $0x6c] sm:$0xf]
        %v440 = vld [vmem:[%s311 + $0x70] sm:$0xf]
        %v441 = vld [vmem:[%s311 + $0x74] sm:$0xf]
        %v442 = vld [vmem:[%s311 + $0x78] sm:$0xf]
        %v443 = vld [vmem:[%s311 + $0x7c] sm:$0xf]
        %v460 = vunpack.c.l.b16 %v428
        %v461 = vunpack.c.l.b16 %v429
        %v462 = vunpack.c.l.b16 %v430
        %v463 = vunpack.c.l.b16 %v431
        %v464 = vunpack.c.l.b16 %v432
        %v465 = vunpack.c.l.b16 %v433
        %v466 = vunpack.c.l.b16 %v434
        %v467 = vunpack.c.l.b16 %v435
        %v468 = vunpack.c.l.b16 %v436
        %v469 = vunpack.c.l.b16 %v437
        %v470 = vunpack.c.l.b16 %v438
        %v471 = vunpack.c.l.b16 %v439
        %v472 = vunpack.c.l.b16 %v440
        %v473 = vunpack.c.l.b16 %v441
        %v474 = vunpack.c.l.b16 %v442
        %v475 = vunpack.c.l.b16 %v443
        %v476 = vpack.c.b16 %v461, %v460
        %v477 = vpack.c.b16 %v463, %v462
        %v478 = vpack.c.b16 %v465, %v464
        %v479 = vpack.c.b16 %v467, %v466
        %v480 = vpack.c.b16 %v469, %v468
        %v481 = vpack.c.b16 %v471, %v470
        %v482 = vpack.c.b16 %v473, %v472
        %v483 = vpack.c.b16 %v475, %v474
        %492 = vmatpush.bf16.msra.mxu0 %v483
        %493 = vmatpush.bf16.msra.mxu0 %v482
        %494 = vmatpush.bf16.msra.mxu0 %v481
        %495 = vmatpush.bf16.msra.mxu0 %v480
        %496 = vmatpush.bf16.msra.mxu0 %v479
        %497 = vmatpush.bf16.msra.mxu0 %v478
        %498 = vmatpush.bf16.msra.mxu0 %v477
        %499 = vmatpush.bf16.msra.mxu0 %v476
        %500 = vmatmul.bf16.gmra.mxu0 %v412
        %v501 = vpop.f32.mrf.mxu0
        %v502 = vadd.f32 0.0, %v501
        %v503 = vpop.f32.mrf.mxu0
        %v504 = vadd.f32 0.0, %v503
        %505 = vmatmul.bf16.gmra.mxu0 %v413
        %v506 = vpop.f32.mrf.mxu0
        %v507 = vadd.f32 0.0, %v506
        %v508 = vpop.f32.mrf.mxu0
        %v509 = vadd.f32 0.0, %v508
        %510 = vmatmul.bf16.gmra.mxu0 %v414
        %v511 = vpop.f32.mrf.mxu0
        %v512 = vadd.f32 0.0, %v511
        %v513 = vpop.f32.mrf.mxu0
        %v514 = vadd.f32 0.0, %v513
        %515 = vmatmul.bf16.gmra.mxu0 %v415
        %v516 = vpop.f32.mrf.mxu0
        %v517 = vadd.f32 0.0, %v516
        %v518 = vpop.f32.mrf.mxu0
        %v519 = vadd.f32 0.0, %v518
        %520 = vmatmul.bf16.gmra.mxu0 %v416
        %v521 = vpop.f32.mrf.mxu0
        %v522 = vadd.f32 0.0, %v521
        %v523 = vpop.f32.mrf.mxu0
        %v524 = vadd.f32 0.0, %v523
        %525 = vmatmul.bf16.gmra.mxu0 %v417
        %v526 = vpop.f32.mrf.mxu0
        %v527 = vadd.f32 0.0, %v526
        %v528 = vpop.f32.mrf.mxu0
        %v529 = vadd.f32 0.0, %v528
        %530 = vmatmul.bf16.gmra.mxu0 %v418
        %v531 = vpop.f32.mrf.mxu0
        %v532 = vadd.f32 0.0, %v531
        %v533 = vpop.f32.mrf.mxu0
        %v534 = vadd.f32 0.0, %v533
        %535 = vmatmul.bf16.gmra.mxu0 %v419
        %v536 = vpop.f32.mrf.mxu0
        %v537 = vadd.f32 0.0, %v536
        %v538 = vpop.f32.mrf.mxu0
        %v539 = vadd.f32 0.0, %v538
        %540 = vmatmul.bf16.gmra.mxu0 %v420
        %v541 = vpop.f32.mrf.mxu0
        %v542 = vadd.f32 0.0, %v541
        %v543 = vpop.f32.mrf.mxu0
        %v544 = vadd.f32 0.0, %v543
        %545 = vmatmul.bf16.gmra.mxu0 %v421
        %v546 = vpop.f32.mrf.mxu0
        %v547 = vadd.f32 0.0, %v546
        %v548 = vpop.f32.mrf.mxu0
        %v549 = vadd.f32 0.0, %v548
        %550 = vmatmul.bf16.gmra.mxu0 %v422
        %v551 = vpop.f32.mrf.mxu0
        %v552 = vadd.f32 0.0, %v551
        %v553 = vpop.f32.mrf.mxu0
        %v554 = vadd.f32 0.0, %v553
        %555 = vmatmul.bf16.gmra.mxu0 %v423
        %v556 = vpop.f32.mrf.mxu0
        %v557 = vadd.f32 0.0, %v556
        %v558 = vpop.f32.mrf.mxu0
        %v559 = vadd.f32 0.0, %v558
        %560 = vmatmul.bf16.gmra.mxu0 %v424
        %v561 = vpop.f32.mrf.mxu0
        %v562 = vadd.f32 0.0, %v561
        %v563 = vpop.f32.mrf.mxu0
        %v564 = vadd.f32 0.0, %v563
        %565 = vmatmul.bf16.gmra.mxu0 %v425
        %v566 = vpop.f32.mrf.mxu0
        %v567 = vadd.f32 0.0, %v566
        %v568 = vpop.f32.mrf.mxu0
        %v569 = vadd.f32 0.0, %v568
        %570 = vmatmul.bf16.gmra.mxu0 %v426
        %v571 = vpop.f32.mrf.mxu0
        %v572 = vadd.f32 0.0, %v571
        %v573 = vpop.f32.mrf.mxu0
        %v574 = vadd.f32 0.0, %v573
        %575 = vmatmul.bf16.gmra.mxu0 %v427
        %v576 = vpop.f32.mrf.mxu0
        %v577 = vadd.f32 0.0, %v576
        %v578 = vpop.f32.mrf.mxu0
        %v579 = vadd.f32 0.0, %v578
        %580 = vdwg.mxu0
        %v597 = vunpack.c.l.b16 %v364
        %v598 = vunpack.c.l.b16 %v365
        %v599 = vunpack.c.l.b16 %v366
        %v600 = vunpack.c.l.b16 %v367
        %v601 = vunpack.c.l.b16 %v368
        %v602 = vunpack.c.l.b16 %v369
        %v603 = vunpack.c.l.b16 %v370
        %v604 = vunpack.c.l.b16 %v371
        %v605 = vunpack.c.l.b16 %v372
        %v606 = vunpack.c.l.b16 %v373
        %v607 = vunpack.c.l.b16 %v374
        %v608 = vunpack.c.l.b16 %v375
        %v609 = vunpack.c.l.b16 %v376
        %v610 = vunpack.c.l.b16 %v377
        %v611 = vunpack.c.l.b16 %v378
        %v612 = vunpack.c.l.b16 %v379
        %v613 = vpack.c.b16 %v598, %v597
        %v614 = vpack.c.b16 %v600, %v599
        %v615 = vpack.c.b16 %v602, %v601
        %v616 = vpack.c.b16 %v604, %v603
        %v617 = vpack.c.b16 %v606, %v605
        %v618 = vpack.c.b16 %v608, %v607
        %v619 = vpack.c.b16 %v610, %v609
        %v620 = vpack.c.b16 %v612, %v611
        %629 = vmatpush.bf16.msra.mxu0 %v620
        %630 = vmatpush.bf16.msra.mxu0 %v619
        %631 = vmatpush.bf16.msra.mxu0 %v618
        %632 = vmatpush.bf16.msra.mxu0 %v617
        %633 = vmatpush.bf16.msra.mxu0 %v616
        %634 = vmatpush.bf16.msra.mxu0 %v615
        %635 = vmatpush.bf16.msra.mxu0 %v614
        %636 = vmatpush.bf16.msra.mxu0 %v613
        %637 = vmatmul.bf16.gmra.mxu0 %v348
        %v638 = vpop.f32.mrf.mxu0
        %v639 = vadd.f32 %v502, %v638
        %v640 = vpop.f32.mrf.mxu0
        %v641 = vadd.f32 %v504, %v640
        %642 = vmatmul.bf16.gmra.mxu0 %v349
        %v643 = vpop.f32.mrf.mxu0
        %v644 = vadd.f32 %v507, %v643
        %v645 = vpop.f32.mrf.mxu0
        %v646 = vadd.f32 %v509, %v645
        %647 = vmatmul.bf16.gmra.mxu0 %v350
        %v648 = vpop.f32.mrf.mxu0
        %v649 = vadd.f32 %v512, %v648
        %v650 = vpop.f32.mrf.mxu0
        %v651 = vadd.f32 %v514, %v650
        %652 = vmatmul.bf16.gmra.mxu0 %v351
        %v653 = vpop.f32.mrf.mxu0
        %v654 = vadd.f32 %v517, %v653
        %v655 = vpop.f32.mrf.mxu0
        %v656 = vadd.f32 %v519, %v655
        %657 = vmatmul.bf16.gmra.mxu0 %v352
        %v658 = vpop.f32.mrf.mxu0
        %v659 = vadd.f32 %v522, %v658
        %v660 = vpop.f32.mrf.mxu0
        %v661 = vadd.f32 %v524, %v660
        %662 = vmatmul.bf16.gmra.mxu0 %v353
        %v663 = vpop.f32.mrf.mxu0
        %v664 = vadd.f32 %v527, %v663
        %v665 = vpop.f32.mrf.mxu0
        %v666 = vadd.f32 %v529, %v665
        %667 = vmatmul.bf16.gmra.mxu0 %v354
        %v668 = vpop.f32.mrf.mxu0
        %v669 = vadd.f32 %v532, %v668
        %v670 = vpop.f32.mrf.mxu0
        %v671 = vadd.f32 %v534, %v670
        %672 = vmatmul.bf16.gmra.mxu0 %v355
        %v673 = vpop.f32.mrf.mxu0
        %v674 = vadd.f32 %v537, %v673
        %v675 = vpop.f32.mrf.mxu0
        %v676 = vadd.f32 %v539, %v675
        %677 = vmatmul.bf16.gmra.mxu0 %v356
        %v678 = vpop.f32.mrf.mxu0
        %v679 = vadd.f32 %v542, %v678
        %v680 = vpop.f32.mrf.mxu0
        %v681 = vadd.f32 %v544, %v680
        %682 = vmatmul.bf16.gmra.mxu0 %v357
        %v683 = vpop.f32.mrf.mxu0
        %v684 = vadd.f32 %v547, %v683
        %v685 = vpop.f32.mrf.mxu0
        %v686 = vadd.f32 %v549, %v685
        %687 = vmatmul.bf16.gmra.mxu0 %v358
        %v688 = vpop.f32.mrf.mxu0
        %v689 = vadd.f32 %v552, %v688
        %v690 = vpop.f32.mrf.mxu0
        %v691 = vadd.f32 %v554, %v690
        %692 = vmatmul.bf16.gmra.mxu0 %v359
        %v693 = vpop.f32.mrf.mxu0
        %v694 = vadd.f32 %v557, %v693
        %v695 = vpop.f32.mrf.mxu0
        %v696 = vadd.f32 %v559, %v695
        %697 = vmatmul.bf16.gmra.mxu0 %v360
        %v698 = vpop.f32.mrf.mxu0
        %v699 = vadd.f32 %v562, %v698
        %v700 = vpop.f32.mrf.mxu0
        %v701 = vadd.f32 %v564, %v700
        %702 = vmatmul.bf16.gmra.mxu0 %v361
        %v703 = vpop.f32.mrf.mxu0
        %v704 = vadd.f32 %v567, %v703
        %v705 = vpop.f32.mrf.mxu0
        %v706 = vadd.f32 %v569, %v705
        %707 = vmatmul.bf16.gmra.mxu0 %v362
        %v708 = vpop.f32.mrf.mxu0
        %v709 = vadd.f32 %v572, %v708
        %v710 = vpop.f32.mrf.mxu0
        %v711 = vadd.f32 %v574, %v710
        %712 = vmatmul.bf16.gmra.mxu0 %v363
        %v713 = vpop.f32.mrf.mxu0
        %v714 = vadd.f32 %v577, %v713
        %v715 = vpop.f32.mrf.mxu0
        %v716 = vadd.f32 %v579, %v715
        %717 = vdwg.mxu0
        %v718 = vld [vmem:[%s307 + $0x2] sm:$0xff]
        %v719 = vld [vmem:[%s307 + $0xa] sm:$0xff]
        %v720 = vld [vmem:[%s307 + $0x1a] sm:$0xff]
        %v721 = vld [vmem:[%s307 + $0x22] sm:$0xff]
        %v722 = vld [vmem:[%s307 + $0x32] sm:$0xff]
        %v723 = vld [vmem:[%s307 + $0x3a] sm:$0xff]
        %v724 = vld [vmem:[%s307 + $0x4a] sm:$0xff]
        %v725 = vld [vmem:[%s307 + $0x52] sm:$0xff]
        %v726 = vld [vmem:[%s307 + $0x62] sm:$0xff]
        %v727 = vld [vmem:[%s307 + $0x6a] sm:$0xff]
        %v728 = vld [vmem:[%s307 + $0x7a] sm:$0xff]
        %v729 = vld [vmem:[%s307 + $0x82] sm:$0xff]
        %v730 = vld [vmem:[%s307 + $0x92] sm:$0xff]
        %v731 = vld [vmem:[%s307 + $0x9a] sm:$0xff]
        %v732 = vld [vmem:[%s307 + $0xaa] sm:$0xff]
        %v733 = vld [vmem:[%s307 + $0xb2] sm:$0xff]
        %v734 = vld [vmem:[%s307 + $0xc2] sm:$0xff]
        %v735 = vld [vmem:[%s307 + $0xca] sm:$0xff]
        %v736 = vld [vmem:[%s307 + $0xda] sm:$0xff]
        %v737 = vld [vmem:[%s307 + $0xe2] sm:$0xff]
        %v738 = vld [vmem:[%s307 + $0xf2] sm:$0xff]
        %v739 = vld [vmem:[%s307 + $0xfa] sm:$0xff]
        %v740 = vld [vmem:[%s307 + $0x10a] sm:$0xff]
        %v741 = vld [vmem:[%s307 + $0x112] sm:$0xff]
        %v742 = vld [vmem:[%s307 + $0x122] sm:$0xff]
        %v743 = vld [vmem:[%s307 + $0x12a] sm:$0xff]
        %v744 = vld [vmem:[%s307 + $0x13a] sm:$0xff]
        %v745 = vld [vmem:[%s307 + $0x142] sm:$0xff]
        %v746 = vld [vmem:[%s307 + $0x152] sm:$0xff]
        %v747 = vld [vmem:[%s307 + $0x15a] sm:$0xff]
        %v748 = vld [vmem:[%s307 + $0x16a] sm:$0xff]
        %v749 = vld [vmem:[%s307 + $0x172] sm:$0xff]
        %v750 = vpack.c.bf16 %v719, %v718
        %v751 = vpack.c.bf16 %v721, %v720
        %v752 = vpack.c.bf16 %v723, %v722
        %v753 = vpack.c.bf16 %v725, %v724
        %v754 = vpack.c.bf16 %v727, %v726
        %v755 = vpack.c.bf16 %v729, %v728
        %v756 = vpack.c.bf16 %v731, %v730
        %v757 = vpack.c.bf16 %v733, %v732
        %v758 = vpack.c.bf16 %v735, %v734
        %v759 = vpack.c.bf16 %v737, %v736
        %v760 = vpack.c.bf16 %v739, %v738
        %v761 = vpack.c.bf16 %v741, %v740
        %v762 = vpack.c.bf16 %v743, %v742
        %v763 = vpack.c.bf16 %v745, %v744
        %v764 = vpack.c.bf16 %v747, %v746
        %v765 = vpack.c.bf16 %v749, %v748
        %v766 = vld [vmem:[%s311 + $0x80] sm:$0xf]
        %v767 = vld [vmem:[%s311 + $0x84] sm:$0xf]
        %v768 = vld [vmem:[%s311 + $0x88] sm:$0xf]
        %v769 = vld [vmem:[%s311 + $0x8c] sm:$0xf]
        %v770 = vld [vmem:[%s311 + $0x90] sm:$0xf]
        %v771 = vld [vmem:[%s311 + $0x94] sm:$0xf]
        %v772 = vld [vmem:[%s311 + $0x98] sm:$0xf]
        %v773 = vld [vmem:[%s311 + $0x9c] sm:$0xf]
        %v774 = vld [vmem:[%s311 + $0xa0] sm:$0xf]
        %v775 = vld [vmem:[%s311 + $0xa4] sm:$0xf]
        %v776 = vld [vmem:[%s311 + $0xa8] sm:$0xf]
        %v777 = vld [vmem:[%s311 + $0xac] sm:$0xf]
        %v778 = vld [vmem:[%s311 + $0xb0] sm:$0xf]
        %v779 = vld [vmem:[%s311 + $0xb4] sm:$0xf]
        %v780 = vld [vmem:[%s311 + $0xb8] sm:$0xf]
        %v781 = vld [vmem:[%s311 + $0xbc] sm:$0xf]
        %v798 = vunpack.c.l.b16 %v766
        %v799 = vunpack.c.l.b16 %v767
        %v800 = vunpack.c.l.b16 %v768
        %v801 = vunpack.c.l.b16 %v769
        %v802 = vunpack.c.l.b16 %v770
        %v803 = vunpack.c.l.b16 %v771
        %v804 = vunpack.c.l.b16 %v772
        %v805 = vunpack.c.l.b16 %v773
        %v806 = vunpack.c.l.b16 %v774
        %v807 = vunpack.c.l.b16 %v775
        %v808 = vunpack.c.l.b16 %v776
        %v809 = vunpack.c.l.b16 %v777
        %v810 = vunpack.c.l.b16 %v778
        %v811 = vunpack.c.l.b16 %v779
        %v812 = vunpack.c.l.b16 %v780
        %v813 = vunpack.c.l.b16 %v781
        %v814 = vpack.c.b16 %v799, %v798
        %v815 = vpack.c.b16 %v801, %v800
        %v816 = vpack.c.b16 %v803, %v802
        %v817 = vpack.c.b16 %v805, %v804
        %v818 = vpack.c.b16 %v807, %v806
        %v819 = vpack.c.b16 %v809, %v808
        %v820 = vpack.c.b16 %v811, %v810
        %v821 = vpack.c.b16 %v813, %v812
        %830 = vmatpush.bf16.msra.mxu0 %v821
        %831 = vmatpush.bf16.msra.mxu0 %v820
        %832 = vmatpush.bf16.msra.mxu0 %v819
        %833 = vmatpush.bf16.msra.mxu0 %v818
        %834 = vmatpush.bf16.msra.mxu0 %v817
        %835 = vmatpush.bf16.msra.mxu0 %v816
        %836 = vmatpush.bf16.msra.mxu0 %v815
        %837 = vmatpush.bf16.msra.mxu0 %v814
        %838 = vmatmul.bf16.gmra.mxu0 %v750
        %v839 = vpop.f32.mrf.mxu0
        %v840 = vadd.f32 0.0, %v839
        %v841 = vpop.f32.mrf.mxu0
        %v842 = vadd.f32 0.0, %v841
        %843 = vmatmul.bf16.gmra.mxu0 %v751
        %v844 = vpop.f32.mrf.mxu0
        %v845 = vadd.f32 0.0, %v844
        %v846 = vpop.f32.mrf.mxu0
        %v847 = vadd.f32 0.0, %v846
        %848 = vmatmul.bf16.gmra.mxu0 %v752
        %v849 = vpop.f32.mrf.mxu0
        %v850 = vadd.f32 0.0, %v849
        %v851 = vpop.f32.mrf.mxu0
        %v852 = vadd.f32 0.0, %v851
        %853 = vmatmul.bf16.gmra.mxu0 %v753
        %v854 = vpop.f32.mrf.mxu0
        %v855 = vadd.f32 0.0, %v854
        %v856 = vpop.f32.mrf.mxu0
        %v857 = vadd.f32 0.0, %v856
        %858 = vmatmul.bf16.gmra.mxu0 %v754
        %v859 = vpop.f32.mrf.mxu0
        %v860 = vadd.f32 0.0, %v859
        %v861 = vpop.f32.mrf.mxu0
        %v862 = vadd.f32 0.0, %v861
        %863 = vmatmul.bf16.gmra.mxu0 %v755
        %v864 = vpop.f32.mrf.mxu0
        %v865 = vadd.f32 0.0, %v864
        %v866 = vpop.f32.mrf.mxu0
        %v867 = vadd.f32 0.0, %v866
        %868 = vmatmul.bf16.gmra.mxu0 %v756
        %v869 = vpop.f32.mrf.mxu0
        %v870 = vadd.f32 0.0, %v869
        %v871 = vpop.f32.mrf.mxu0
        %v872 = vadd.f32 0.0, %v871
        %873 = vmatmul.bf16.gmra.mxu0 %v757
        %v874 = vpop.f32.mrf.mxu0
        %v875 = vadd.f32 0.0, %v874
        %v876 = vpop.f32.mrf.mxu0
        %v877 = vadd.f32 0.0, %v876
        %878 = vmatmul.bf16.gmra.mxu0 %v758
        %v879 = vpop.f32.mrf.mxu0
        %v880 = vadd.f32 0.0, %v879
        %v881 = vpop.f32.mrf.mxu0
        %v882 = vadd.f32 0.0, %v881
        %883 = vmatmul.bf16.gmra.mxu0 %v759
        %v884 = vpop.f32.mrf.mxu0
        %v885 = vadd.f32 0.0, %v884
        %v886 = vpop.f32.mrf.mxu0
        %v887 = vadd.f32 0.0, %v886
        %888 = vmatmul.bf16.gmra.mxu0 %v760
        %v889 = vpop.f32.mrf.mxu0
        %v890 = vadd.f32 0.0, %v889
        %v891 = vpop.f32.mrf.mxu0
        %v892 = vadd.f32 0.0, %v891
        %893 = vmatmul.bf16.gmra.mxu0 %v761
        %v894 = vpop.f32.mrf.mxu0
        %v895 = vadd.f32 0.0, %v894
        %v896 = vpop.f32.mrf.mxu0
        %v897 = vadd.f32 0.0, %v896
        %898 = vmatmul.bf16.gmra.mxu0 %v762
        %v899 = vpop.f32.mrf.mxu0
        %v900 = vadd.f32 0.0, %v899
        %v901 = vpop.f32.mrf.mxu0
        %v902 = vadd.f32 0.0, %v901
        %903 = vmatmul.bf16.gmra.mxu0 %v763
        %v904 = vpop.f32.mrf.mxu0
        %v905 = vadd.f32 0.0, %v904
        %v906 = vpop.f32.mrf.mxu0
        %v907 = vadd.f32 0.0, %v906
        %908 = vmatmul.bf16.gmra.mxu0 %v764
        %v909 = vpop.f32.mrf.mxu0
        %v910 = vadd.f32 0.0, %v909
        %v911 = vpop.f32.mrf.mxu0
        %v912 = vadd.f32 0.0, %v911
        %913 = vmatmul.bf16.gmra.mxu0 %v765
        %v914 = vpop.f32.mrf.mxu0
        %v915 = vadd.f32 0.0, %v914
        %v916 = vpop.f32.mrf.mxu0
        %v917 = vadd.f32 0.0, %v916
        %918 = vdwg.mxu0
        %v919 = vadd.f32 %v639, %v840
        %v920 = vadd.f32 %v641, %v842
        %v921 = vadd.f32 %v644, %v845
        %v922 = vadd.f32 %v646, %v847
        %v923 = vadd.f32 %v649, %v850
        %v924 = vadd.f32 %v651, %v852
        %v925 = vadd.f32 %v654, %v855
        %v926 = vadd.f32 %v656, %v857
        %v927 = vadd.f32 %v659, %v860
        %v928 = vadd.f32 %v661, %v862
        %v929 = vadd.f32 %v664, %v865
        %v930 = vadd.f32 %v666, %v867
        %v931 = vadd.f32 %v669, %v870
        %v932 = vadd.f32 %v671, %v872
        %v933 = vadd.f32 %v674, %v875
        %v934 = vadd.f32 %v676, %v877
        %v935 = vadd.f32 %v679, %v880
        %v936 = vadd.f32 %v681, %v882
        %v937 = vadd.f32 %v684, %v885
        %v938 = vadd.f32 %v686, %v887
        %v939 = vadd.f32 %v689, %v890
        %v940 = vadd.f32 %v691, %v892
        %v941 = vadd.f32 %v694, %v895
        %v942 = vadd.f32 %v696, %v897
        %v943 = vadd.f32 %v699, %v900
        %v944 = vadd.f32 %v701, %v902
        %v945 = vadd.f32 %v704, %v905
        %v946 = vadd.f32 %v706, %v907
        %v947 = vadd.f32 %v709, %v910
        %v948 = vadd.f32 %v711, %v912
        %v949 = vadd.f32 %v714, %v915
        %v950 = vadd.f32 %v716, %v917
        %s951 = scalar_lea.vmem %s307, 24
        %v952 = vld [vmem:[%s951] sm:$0xff]
        %v953 = vld [vmem:[%s951 + $0x8] sm:$0xff]
        %v954 = vld [vmem:[%s951 + $0x18] sm:$0xff]
        %v955 = vld [vmem:[%s951 + $0x20] sm:$0xff]
        %v956 = vld [vmem:[%s951 + $0x30] sm:$0xff]
        %v957 = vld [vmem:[%s951 + $0x38] sm:$0xff]
        %v958 = vld [vmem:[%s951 + $0x48] sm:$0xff]
        %v959 = vld [vmem:[%s951 + $0x50] sm:$0xff]
        %v960 = vld [vmem:[%s951 + $0x60] sm:$0xff]
        %v961 = vld [vmem:[%s951 + $0x68] sm:$0xff]
        %v962 = vld [vmem:[%s951 + $0x78] sm:$0xff]
        %v963 = vld [vmem:[%s951 + $0x80] sm:$0xff]
        %v964 = vld [vmem:[%s951 + $0x90] sm:$0xff]
        %v965 = vld [vmem:[%s951 + $0x98] sm:$0xff]
        %v966 = vld [vmem:[%s951 + $0xa8] sm:$0xff]
        %v967 = vld [vmem:[%s951 + $0xb0] sm:$0xff]
        %v968 = vld [vmem:[%s951 + $0xc0] sm:$0xff]
        %v969 = vld [vmem:[%s951 + $0xc8] sm:$0xff]
        %v970 = vld [vmem:[%s951 + $0xd8] sm:$0xff]
        %v971 = vld [vmem:[%s951 + $0xe0] sm:$0xff]
        %v972 = vld [vmem:[%s951 + $0xf0] sm:$0xff]
        %v973 = vld [vmem:[%s951 + $0xf8] sm:$0xff]
        %v974 = vld [vmem:[%s951 + $0x108] sm:$0xff]
        %v975 = vld [vmem:[%s951 + $0x110] sm:$0xff]
        %v976 = vld [vmem:[%s951 + $0x120] sm:$0xff]
        %v977 = vld [vmem:[%s951 + $0x128] sm:$0xff]
        %v978 = vld [vmem:[%s951 + $0x138] sm:$0xff]
        %v979 = vld [vmem:[%s951 + $0x140] sm:$0xff]
        %v980 = vld [vmem:[%s951 + $0x150] sm:$0xff]
        %v981 = vld [vmem:[%s951 + $0x158] sm:$0xff]
        %v982 = vld [vmem:[%s951 + $0x168] sm:$0xff]
        %v983 = vld [vmem:[%s951 + $0x170] sm:$0xff]
        %v984 = vpack.c.bf16 %v953, %v952
        %v985 = vpack.c.bf16 %v955, %v954
        %v986 = vpack.c.bf16 %v957, %v956
        %v987 = vpack.c.bf16 %v959, %v958
        %v988 = vpack.c.bf16 %v961, %v960
        %v989 = vpack.c.bf16 %v963, %v962
        %v990 = vpack.c.bf16 %v965, %v964
        %v991 = vpack.c.bf16 %v967, %v966
        %v992 = vpack.c.bf16 %v969, %v968
        %v993 = vpack.c.bf16 %v971, %v970
        %v994 = vpack.c.bf16 %v973, %v972
        %v995 = vpack.c.bf16 %v975, %v974
        %v996 = vpack.c.bf16 %v977, %v976
        %v997 = vpack.c.bf16 %v979, %v978
        %v998 = vpack.c.bf16 %v981, %v980
        %v999 = vpack.c.bf16 %v983, %v982
        %v1000 = vld [vmem:[%s311 + $0xc0] sm:$0xf]
        %v1001 = vld [vmem:[%s311 + $0xc4] sm:$0xf]
        %v1002 = vld [vmem:[%s311 + $0xc8] sm:$0xf]
        %v1003 = vld [vmem:[%s311 + $0xcc] sm:$0xf]
        %v1004 = vld [vmem:[%s311 + $0xd0] sm:$0xf]
        %v1005 = vld [vmem:[%s311 + $0xd4] sm:$0xf]
        %v1006 = vld [vmem:[%s311 + $0xd8] sm:$0xf]
        %v1007 = vld [vmem:[%s311 + $0xdc] sm:$0xf]
        %v1008 = vld [vmem:[%s311 + $0xe0] sm:$0xf]
        %v1009 = vld [vmem:[%s311 + $0xe4] sm:$0xf]
        %v1010 = vld [vmem:[%s311 + $0xe8] sm:$0xf]
        %v1011 = vld [vmem:[%s311 + $0xec] sm:$0xf]
        %v1012 = vld [vmem:[%s311 + $0xf0] sm:$0xf]
        %v1013 = vld [vmem:[%s311 + $0xf4] sm:$0xf]
        %v1014 = vld [vmem:[%s311 + $0xf8] sm:$0xf]
        %v1015 = vld [vmem:[%s311 + $0xfc] sm:$0xf]
        %v1032 = vunpack.c.l.b16 %v1000
        %v1033 = vunpack.c.l.b16 %v1001
        %v1034 = vunpack.c.l.b16 %v1002
        %v1035 = vunpack.c.l.b16 %v1003
        %v1036 = vunpack.c.l.b16 %v1004
        %v1037 = vunpack.c.l.b16 %v1005
        %v1038 = vunpack.c.l.b16 %v1006
        %v1039 = vunpack.c.l.b16 %v1007
        %v1040 = vunpack.c.l.b16 %v1008
        %v1041 = vunpack.c.l.b16 %v1009
        %v1042 = vunpack.c.l.b16 %v1010
        %v1043 = vunpack.c.l.b16 %v1011
        %v1044 = vunpack.c.l.b16 %v1012
        %v1045 = vunpack.c.l.b16 %v1013
        %v1046 = vunpack.c.l.b16 %v1014
        %v1047 = vunpack.c.l.b16 %v1015
        %v1048 = vpack.c.b16 %v1033, %v1032
        %v1049 = vpack.c.b16 %v1035, %v1034
        %v1050 = vpack.c.b16 %v1037, %v1036
        %v1051 = vpack.c.b16 %v1039, %v1038
        %v1052 = vpack.c.b16 %v1041, %v1040
        %v1053 = vpack.c.b16 %v1043, %v1042
        %v1054 = vpack.c.b16 %v1045, %v1044
        %v1055 = vpack.c.b16 %v1047, %v1046
        %1064 = vmatpush.bf16.msra.mxu0 %v1055
        %1065 = vmatpush.bf16.msra.mxu0 %v1054
        %1066 = vmatpush.bf16.msra.mxu0 %v1053
        %1067 = vmatpush.bf16.msra.mxu0 %v1052
        %1068 = vmatpush.bf16.msra.mxu0 %v1051
        %1069 = vmatpush.bf16.msra.mxu0 %v1050
        %1070 = vmatpush.bf16.msra.mxu0 %v1049
        %1071 = vmatpush.bf16.msra.mxu0 %v1048
        %1072 = vmatmul.bf16.gmra.mxu0 %v984
        %v1073 = vpop.f32.mrf.mxu0
        %v1074 = vadd.f32 0.0, %v1073
        %v1075 = vpop.f32.mrf.mxu0
        %v1076 = vadd.f32 0.0, %v1075
        %1077 = vmatmul.bf16.gmra.mxu0 %v985
        %v1078 = vpop.f32.mrf.mxu0
        %v1079 = vadd.f32 0.0, %v1078
        %v1080 = vpop.f32.mrf.mxu0
        %v1081 = vadd.f32 0.0, %v1080
        %1082 = vmatmul.bf16.gmra.mxu0 %v986
        %v1083 = vpop.f32.mrf.mxu0
        %v1084 = vadd.f32 0.0, %v1083
        %v1085 = vpop.f32.mrf.mxu0
        %v1086 = vadd.f32 0.0, %v1085
        %1087 = vmatmul.bf16.gmra.mxu0 %v987
        %v1088 = vpop.f32.mrf.mxu0
        %v1089 = vadd.f32 0.0, %v1088
        %v1090 = vpop.f32.mrf.mxu0
        %v1091 = vadd.f32 0.0, %v1090
        %1092 = vmatmul.bf16.gmra.mxu0 %v988
        %v1093 = vpop.f32.mrf.mxu0
        %v1094 = vadd.f32 0.0, %v1093
        %v1095 = vpop.f32.mrf.mxu0
        %v1096 = vadd.f32 0.0, %v1095
        %1097 = vmatmul.bf16.gmra.mxu0 %v989
        %v1098 = vpop.f32.mrf.mxu0
        %v1099 = vadd.f32 0.0, %v1098
        %v1100 = vpop.f32.mrf.mxu0
        %v1101 = vadd.f32 0.0, %v1100
        %1102 = vmatmul.bf16.gmra.mxu0 %v990
        %v1103 = vpop.f32.mrf.mxu0
        %v1104 = vadd.f32 0.0, %v1103
        %v1105 = vpop.f32.mrf.mxu0
        %v1106 = vadd.f32 0.0, %v1105
        %1107 = vmatmul.bf16.gmra.mxu0 %v991
        %v1108 = vpop.f32.mrf.mxu0
        %v1109 = vadd.f32 0.0, %v1108
        %v1110 = vpop.f32.mrf.mxu0
        %v1111 = vadd.f32 0.0, %v1110
        %1112 = vmatmul.bf16.gmra.mxu0 %v992
        %v1113 = vpop.f32.mrf.mxu0
        %v1114 = vadd.f32 0.0, %v1113
        %v1115 = vpop.f32.mrf.mxu0
        %v1116 = vadd.f32 0.0, %v1115
        %1117 = vmatmul.bf16.gmra.mxu0 %v993
        %v1118 = vpop.f32.mrf.mxu0
        %v1119 = vadd.f32 0.0, %v1118
        %v1120 = vpop.f32.mrf.mxu0
        %v1121 = vadd.f32 0.0, %v1120
        %1122 = vmatmul.bf16.gmra.mxu0 %v994
        %v1123 = vpop.f32.mrf.mxu0
        %v1124 = vadd.f32 0.0, %v1123
        %v1125 = vpop.f32.mrf.mxu0
        %v1126 = vadd.f32 0.0, %v1125
        %1127 = vmatmul.bf16.gmra.mxu0 %v995
        %v1128 = vpop.f32.mrf.mxu0
        %v1129 = vadd.f32 0.0, %v1128
        %v1130 = vpop.f32.mrf.mxu0
        %v1131 = vadd.f32 0.0, %v1130
        %1132 = vmatmul.bf16.gmra.mxu0 %v996
        %v1133 = vpop.f32.mrf.mxu0
        %v1134 = vadd.f32 0.0, %v1133
        %v1135 = vpop.f32.mrf.mxu0
        %v1136 = vadd.f32 0.0, %v1135
        %1137 = vmatmul.bf16.gmra.mxu0 %v997
        %v1138 = vpop.f32.mrf.mxu0
        %v1139 = vadd.f32 0.0, %v1138
        %v1140 = vpop.f32.mrf.mxu0
        %v1141 = vadd.f32 0.0, %v1140
        %1142 = vmatmul.bf16.gmra.mxu0 %v998
        %v1143 = vpop.f32.mrf.mxu0
        %v1144 = vadd.f32 0.0, %v1143
        %v1145 = vpop.f32.mrf.mxu0
        %v1146 = vadd.f32 0.0, %v1145
        %1147 = vmatmul.bf16.gmra.mxu0 %v999
        %v1148 = vpop.f32.mrf.mxu0
        %v1149 = vadd.f32 0.0, %v1148
        %v1150 = vpop.f32.mrf.mxu0
        %v1151 = vadd.f32 0.0, %v1150
        %1152 = vdwg.mxu0
        %v1153 = vadd.f32 %v919, %v1074
        %v1154 = vadd.f32 %v920, %v1076
        %v1155 = vadd.f32 %v921, %v1079
        %v1156 = vadd.f32 %v922, %v1081
        %v1157 = vadd.f32 %v923, %v1084
        %v1158 = vadd.f32 %v924, %v1086
        %v1159 = vadd.f32 %v925, %v1089
        %v1160 = vadd.f32 %v926, %v1091
        %v1161 = vadd.f32 %v927, %v1094
        %v1162 = vadd.f32 %v928, %v1096
        %v1163 = vadd.f32 %v929, %v1099
        %v1164 = vadd.f32 %v930, %v1101
        %v1165 = vadd.f32 %v931, %v1104
        %v1166 = vadd.f32 %v932, %v1106
        %v1167 = vadd.f32 %v933, %v1109
        %v1168 = vadd.f32 %v934, %v1111
        %v1169 = vadd.f32 %v935, %v1114
        %v1170 = vadd.f32 %v936, %v1116
        %v1171 = vadd.f32 %v937, %v1119
        %v1172 = vadd.f32 %v938, %v1121
        %v1173 = vadd.f32 %v939, %v1124
        %v1174 = vadd.f32 %v940, %v1126
        %v1175 = vadd.f32 %v941, %v1129
        %v1176 = vadd.f32 %v942, %v1131
        %v1177 = vadd.f32 %v943, %v1134
        %v1178 = vadd.f32 %v944, %v1136
        %v1179 = vadd.f32 %v945, %v1139
        %v1180 = vadd.f32 %v946, %v1141
        %v1181 = vadd.f32 %v947, %v1144
        %v1182 = vadd.f32 %v948, %v1146
        %v1183 = vadd.f32 %v949, %v1149
        %v1184 = vadd.f32 %v950, %v1151
        %v1185 = vld [vmem:[%s951 + $0x1] sm:$0xff]
        %v1186 = vld [vmem:[%s951 + $0x9] sm:$0xff]
        %v1187 = vld [vmem:[%s951 + $0x19] sm:$0xff]
        %v1188 = vld [vmem:[%s951 + $0x21] sm:$0xff]
        %v1189 = vld [vmem:[%s951 + $0x31] sm:$0xff]
        %v1190 = vld [vmem:[%s951 + $0x39] sm:$0xff]
        %v1191 = vld [vmem:[%s951 + $0x49] sm:$0xff]
        %v1192 = vld [vmem:[%s951 + $0x51] sm:$0xff]
        %v1193 = vld [vmem:[%s951 + $0x61] sm:$0xff]
        %v1194 = vld [vmem:[%s951 + $0x69] sm:$0xff]
        %v1195 = vld [vmem:[%s951 + $0x79] sm:$0xff]
        %v1196 = vld [vmem:[%s951 + $0x81] sm:$0xff]
        %v1197 = vld [vmem:[%s951 + $0x91] sm:$0xff]
        %v1198 = vld [vmem:[%s951 + $0x99] sm:$0xff]
        %v1199 = vld [vmem:[%s951 + $0xa9] sm:$0xff]
        %v1200 = vld [vmem:[%s951 + $0xb1] sm:$0xff]
        %v1201 = vld [vmem:[%s951 + $0xc1] sm:$0xff]
        %v1202 = vld [vmem:[%s951 + $0xc9] sm:$0xff]
        %v1203 = vld [vmem:[%s951 + $0xd9] sm:$0xff]
        %v1204 = vld [vmem:[%s951 + $0xe1] sm:$0xff]
        %v1205 = vld [vmem:[%s951 + $0xf1] sm:$0xff]
        %v1206 = vld [vmem:[%s951 + $0xf9] sm:$0xff]
        %v1207 = vld [vmem:[%s951 + $0x109] sm:$0xff]
        %v1208 = vld [vmem:[%s951 + $0x111] sm:$0xff]
        %v1209 = vld [vmem:[%s951 + $0x121] sm:$0xff]
        %v1210 = vld [vmem:[%s951 + $0x129] sm:$0xff]
        %v1211 = vld [vmem:[%s951 + $0x139] sm:$0xff]
        %v1212 = vld [vmem:[%s951 + $0x141] sm:$0xff]
        %v1213 = vld [vmem:[%s951 + $0x151] sm:$0xff]
        %v1214 = vld [vmem:[%s951 + $0x159] sm:$0xff]
        %v1215 = vld [vmem:[%s951 + $0x169] sm:$0xff]
        %v1216 = vld [vmem:[%s951 + $0x171] sm:$0xff]
        %v1217 = vpack.c.bf16 %v1186, %v1185
        %v1218 = vpack.c.bf16 %v1188, %v1187
        %v1219 = vpack.c.bf16 %v1190, %v1189
        %v1220 = vpack.c.bf16 %v1192, %v1191
        %v1221 = vpack.c.bf16 %v1194, %v1193
        %v1222 = vpack.c.bf16 %v1196, %v1195
        %v1223 = vpack.c.bf16 %v1198, %v1197
        %v1224 = vpack.c.bf16 %v1200, %v1199
        %v1225 = vpack.c.bf16 %v1202, %v1201
        %v1226 = vpack.c.bf16 %v1204, %v1203
        %v1227 = vpack.c.bf16 %v1206, %v1205
        %v1228 = vpack.c.bf16 %v1208, %v1207
        %v1229 = vpack.c.bf16 %v1210, %v1209
        %v1230 = vpack.c.bf16 %v1212, %v1211
        %v1231 = vpack.c.bf16 %v1214, %v1213
        %v1232 = vpack.c.bf16 %v1216, %v1215
        %v1233 = vld [vmem:[%s311 + $0x100] sm:$0xf]
        %v1234 = vld [vmem:[%s311 + $0x104] sm:$0xf]
        %v1235 = vld [vmem:[%s311 + $0x108] sm:$0xf]
        %v1236 = vld [vmem:[%s311 + $0x10c] sm:$0xf]
        %v1237 = vld [vmem:[%s311 + $0x110] sm:$0xf]
        %v1238 = vld [vmem:[%s311 + $0x114] sm:$0xf]
        %v1239 = vld [vmem:[%s311 + $0x118] sm:$0xf]
        %v1240 = vld [vmem:[%s311 + $0x11c] sm:$0xf]
        %v1241 = vld [vmem:[%s311 + $0x120] sm:$0xf]
        %v1242 = vld [vmem:[%s311 + $0x124] sm:$0xf]
        %v1243 = vld [vmem:[%s311 + $0x128] sm:$0xf]
        %v1244 = vld [vmem:[%s311 + $0x12c] sm:$0xf]
        %v1245 = vld [vmem:[%s311 + $0x130] sm:$0xf]
        %v1246 = vld [vmem:[%s311 + $0x134] sm:$0xf]
        %v1247 = vld [vmem:[%s311 + $0x138] sm:$0xf]
        %v1248 = vld [vmem:[%s311 + $0x13c] sm:$0xf]
        %v1265 = vunpack.c.l.b16 %v1233
        %v1266 = vunpack.c.l.b16 %v1234
        %v1267 = vunpack.c.l.b16 %v1235
        %v1268 = vunpack.c.l.b16 %v1236
        %v1269 = vunpack.c.l.b16 %v1237
        %v1270 = vunpack.c.l.b16 %v1238
        %v1271 = vunpack.c.l.b16 %v1239
        %v1272 = vunpack.c.l.b16 %v1240
        %v1273 = vunpack.c.l.b16 %v1241
        %v1274 = vunpack.c.l.b16 %v1242
        %v1275 = vunpack.c.l.b16 %v1243
        %v1276 = vunpack.c.l.b16 %v1244
        %v1277 = vunpack.c.l.b16 %v1245
        %v1278 = vunpack.c.l.b16 %v1246
        %v1279 = vunpack.c.l.b16 %v1247
        %v1280 = vunpack.c.l.b16 %v1248
        %v1281 = vpack.c.b16 %v1266, %v1265
        %v1282 = vpack.c.b16 %v1268, %v1267
        %v1283 = vpack.c.b16 %v1270, %v1269
        %v1284 = vpack.c.b16 %v1272, %v1271
        %v1285 = vpack.c.b16 %v1274, %v1273
        %v1286 = vpack.c.b16 %v1276, %v1275
        %v1287 = vpack.c.b16 %v1278, %v1277
        %v1288 = vpack.c.b16 %v1280, %v1279
        %1297 = vmatpush.bf16.msra.mxu0 %v1288
        %1298 = vmatpush.bf16.msra.mxu0 %v1287
        %1299 = vmatpush.bf16.msra.mxu0 %v1286
        %1300 = vmatpush.bf16.msra.mxu0 %v1285
        %1301 = vmatpush.bf16.msra.mxu0 %v1284
        %1302 = vmatpush.bf16.msra.mxu0 %v1283
        %1303 = vmatpush.bf16.msra.mxu0 %v1282
        %1304 = vmatpush.bf16.msra.mxu0 %v1281
        %1305 = vmatmul.bf16.gmra.mxu0 %v1217
        %v1306 = vpop.f32.mrf.mxu0
        %v1307 = vadd.f32 0.0, %v1306
        %v1308 = vpop.f32.mrf.mxu0
        %v1309 = vadd.f32 0.0, %v1308
        %1310 = vmatmul.bf16.gmra.mxu0 %v1218
        %v1311 = vpop.f32.mrf.mxu0
        %v1312 = vadd.f32 0.0, %v1311
        %v1313 = vpop.f32.mrf.mxu0
        %v1314 = vadd.f32 0.0, %v1313
        %1315 = vmatmul.bf16.gmra.mxu0 %v1219
        %v1316 = vpop.f32.mrf.mxu0
        %v1317 = vadd.f32 0.0, %v1316
        %v1318 = vpop.f32.mrf.mxu0
        %v1319 = vadd.f32 0.0, %v1318
        %1320 = vmatmul.bf16.gmra.mxu0 %v1220
        %v1321 = vpop.f32.mrf.mxu0
        %v1322 = vadd.f32 0.0, %v1321
        %v1323 = vpop.f32.mrf.mxu0
        %v1324 = vadd.f32 0.0, %v1323
        %1325 = vmatmul.bf16.gmra.mxu0 %v1221
        %v1326 = vpop.f32.mrf.mxu0
        %v1327 = vadd.f32 0.0, %v1326
        %v1328 = vpop.f32.mrf.mxu0
        %v1329 = vadd.f32 0.0, %v1328
        %1330 = vmatmul.bf16.gmra.mxu0 %v1222
        %v1331 = vpop.f32.mrf.mxu0
        %v1332 = vadd.f32 0.0, %v1331
        %v1333 = vpop.f32.mrf.mxu0
        %v1334 = vadd.f32 0.0, %v1333
        %1335 = vmatmul.bf16.gmra.mxu0 %v1223
        %v1336 = vpop.f32.mrf.mxu0
        %v1337 = vadd.f32 0.0, %v1336
        %v1338 = vpop.f32.mrf.mxu0
        %v1339 = vadd.f32 0.0, %v1338
        %1340 = vmatmul.bf16.gmra.mxu0 %v1224
        %v1341 = vpop.f32.mrf.mxu0
        %v1342 = vadd.f32 0.0, %v1341
        %v1343 = vpop.f32.mrf.mxu0
        %v1344 = vadd.f32 0.0, %v1343
        %1345 = vmatmul.bf16.gmra.mxu0 %v1225
        %v1346 = vpop.f32.mrf.mxu0
        %v1347 = vadd.f32 0.0, %v1346
        %v1348 = vpop.f32.mrf.mxu0
        %v1349 = vadd.f32 0.0, %v1348
        %1350 = vmatmul.bf16.gmra.mxu0 %v1226
        %v1351 = vpop.f32.mrf.mxu0
        %v1352 = vadd.f32 0.0, %v1351
        %v1353 = vpop.f32.mrf.mxu0
        %v1354 = vadd.f32 0.0, %v1353
        %1355 = vmatmul.bf16.gmra.mxu0 %v1227
        %v1356 = vpop.f32.mrf.mxu0
        %v1357 = vadd.f32 0.0, %v1356
        %v1358 = vpop.f32.mrf.mxu0
        %v1359 = vadd.f32 0.0, %v1358
        %1360 = vmatmul.bf16.gmra.mxu0 %v1228
        %v1361 = vpop.f32.mrf.mxu0
        %v1362 = vadd.f32 0.0, %v1361
        %v1363 = vpop.f32.mrf.mxu0
        %v1364 = vadd.f32 0.0, %v1363
        %1365 = vmatmul.bf16.gmra.mxu0 %v1229
        %v1366 = vpop.f32.mrf.mxu0
        %v1367 = vadd.f32 0.0, %v1366
        %v1368 = vpop.f32.mrf.mxu0
        %v1369 = vadd.f32 0.0, %v1368
        %1370 = vmatmul.bf16.gmra.mxu0 %v1230
        %v1371 = vpop.f32.mrf.mxu0
        %v1372 = vadd.f32 0.0, %v1371
        %v1373 = vpop.f32.mrf.mxu0
        %v1374 = vadd.f32 0.0, %v1373
        %1375 = vmatmul.bf16.gmra.mxu0 %v1231
        %v1376 = vpop.f32.mrf.mxu0
        %v1377 = vadd.f32 0.0, %v1376
        %v1378 = vpop.f32.mrf.mxu0
        %v1379 = vadd.f32 0.0, %v1378
        %1380 = vmatmul.bf16.gmra.mxu0 %v1232
        %v1381 = vpop.f32.mrf.mxu0
        %v1382 = vadd.f32 0.0, %v1381
        %v1383 = vpop.f32.mrf.mxu0
        %v1384 = vadd.f32 0.0, %v1383
        %1385 = vdwg.mxu0
        %v1386 = vadd.f32 %v1153, %v1307
        %v1387 = vadd.f32 %v1154, %v1309
        %v1388 = vadd.f32 %v1155, %v1312
        %v1389 = vadd.f32 %v1156, %v1314
        %v1390 = vadd.f32 %v1157, %v1317
        %v1391 = vadd.f32 %v1158, %v1319
        %v1392 = vadd.f32 %v1159, %v1322
        %v1393 = vadd.f32 %v1160, %v1324
        %v1394 = vadd.f32 %v1161, %v1327
        %v1395 = vadd.f32 %v1162, %v1329
        %v1396 = vadd.f32 %v1163, %v1332
        %v1397 = vadd.f32 %v1164, %v1334
        %v1398 = vadd.f32 %v1165, %v1337
        %v1399 = vadd.f32 %v1166, %v1339
        %v1400 = vadd.f32 %v1167, %v1342
        %v1401 = vadd.f32 %v1168, %v1344
        %v1402 = vadd.f32 %v1169, %v1347
        %v1403 = vadd.f32 %v1170, %v1349
        %v1404 = vadd.f32 %v1171, %v1352
        %v1405 = vadd.f32 %v1172, %v1354
        %v1406 = vadd.f32 %v1173, %v1357
        %v1407 = vadd.f32 %v1174, %v1359
        %v1408 = vadd.f32 %v1175, %v1362
        %v1409 = vadd.f32 %v1176, %v1364
        %v1410 = vadd.f32 %v1177, %v1367
        %v1411 = vadd.f32 %v1178, %v1369
        %v1412 = vadd.f32 %v1179, %v1372
        %v1413 = vadd.f32 %v1180, %v1374
        %v1414 = vadd.f32 %v1181, %v1377
        %v1415 = vadd.f32 %v1182, %v1379
        %v1416 = vadd.f32 %v1183, %v1382
        %v1417 = vadd.f32 %v1184, %v1384
        %v1418 = vld [vmem:[%s951 + $0x2] sm:$0xff]
        %v1419 = vld [vmem:[%s951 + $0xa] sm:$0xff]
        %v1420 = vld [vmem:[%s951 + $0x1a] sm:$0xff]
        %v1421 = vld [vmem:[%s951 + $0x22] sm:$0xff]
        %v1422 = vld [vmem:[%s951 + $0x32] sm:$0xff]
        %v1423 = vld [vmem:[%s951 + $0x3a] sm:$0xff]
        %v1424 = vld [vmem:[%s951 + $0x4a] sm:$0xff]
        %v1425 = vld [vmem:[%s951 + $0x52] sm:$0xff]
        %v1426 = vld [vmem:[%s951 + $0x62] sm:$0xff]
        %v1427 = vld [vmem:[%s951 + $0x6a] sm:$0xff]
        %v1428 = vld [vmem:[%s951 + $0x7a] sm:$0xff]
        %v1429 = vld [vmem:[%s951 + $0x82] sm:$0xff]
        %v1430 = vld [vmem:[%s951 + $0x92] sm:$0xff]
        %v1431 = vld [vmem:[%s951 + $0x9a] sm:$0xff]
        %v1432 = vld [vmem:[%s951 + $0xaa] sm:$0xff]
        %v1433 = vld [vmem:[%s951 + $0xb2] sm:$0xff]
        %v1434 = vld [vmem:[%s951 + $0xc2] sm:$0xff]
        %v1435 = vld [vmem:[%s951 + $0xca] sm:$0xff]
        %v1436 = vld [vmem:[%s951 + $0xda] sm:$0xff]
        %v1437 = vld [vmem:[%s951 + $0xe2] sm:$0xff]
        %v1438 = vld [vmem:[%s951 + $0xf2] sm:$0xff]
        %v1439 = vld [vmem:[%s951 + $0xfa] sm:$0xff]
        %v1440 = vld [vmem:[%s951 + $0x10a] sm:$0xff]
        %v1441 = vld [vmem:[%s951 + $0x112] sm:$0xff]
        %v1442 = vld [vmem:[%s951 + $0x122] sm:$0xff]
        %v1443 = vld [vmem:[%s951 + $0x12a] sm:$0xff]
        %v1444 = vld [vmem:[%s951 + $0x13a] sm:$0xff]
        %v1445 = vld [vmem:[%s951 + $0x142] sm:$0xff]
        %v1446 = vld [vmem:[%s951 + $0x152] sm:$0xff]
        %v1447 = vld [vmem:[%s951 + $0x15a] sm:$0xff]
        %v1448 = vld [vmem:[%s951 + $0x16a] sm:$0xff]
        %v1449 = vld [vmem:[%s951 + $0x172] sm:$0xff]
        %v1450 = vpack.c.bf16 %v1419, %v1418
        %v1451 = vpack.c.bf16 %v1421, %v1420
        %v1452 = vpack.c.bf16 %v1423, %v1422
        %v1453 = vpack.c.bf16 %v1425, %v1424
        %v1454 = vpack.c.bf16 %v1427, %v1426
        %v1455 = vpack.c.bf16 %v1429, %v1428
        %v1456 = vpack.c.bf16 %v1431, %v1430
        %v1457 = vpack.c.bf16 %v1433, %v1432
        %v1458 = vpack.c.bf16 %v1435, %v1434
        %v1459 = vpack.c.bf16 %v1437, %v1436
        %v1460 = vpack.c.bf16 %v1439, %v1438
        %v1461 = vpack.c.bf16 %v1441, %v1440
        %v1462 = vpack.c.bf16 %v1443, %v1442
        %v1463 = vpack.c.bf16 %v1445, %v1444
        %v1464 = vpack.c.bf16 %v1447, %v1446
        %v1465 = vpack.c.bf16 %v1449, %v1448
        %v1466 = vld [vmem:[%s311 + $0x140] sm:$0xf]
        %v1467 = vld [vmem:[%s311 + $0x144] sm:$0xf]
        %v1468 = vld [vmem:[%s311 + $0x148] sm:$0xf]
        %v1469 = vld [vmem:[%s311 + $0x14c] sm:$0xf]
        %v1470 = vld [vmem:[%s311 + $0x150] sm:$0xf]
        %v1471 = vld [vmem:[%s311 + $0x154] sm:$0xf]
        %v1472 = vld [vmem:[%s311 + $0x158] sm:$0xf]
        %v1473 = vld [vmem:[%s311 + $0x15c] sm:$0xf]
        %v1474 = vld [vmem:[%s311 + $0x160] sm:$0xf]
        %v1475 = vld [vmem:[%s311 + $0x164] sm:$0xf]
        %v1476 = vld [vmem:[%s311 + $0x168] sm:$0xf]
        %v1477 = vld [vmem:[%s311 + $0x16c] sm:$0xf]
        %v1478 = vld [vmem:[%s311 + $0x170] sm:$0xf]
        %v1479 = vld [vmem:[%s311 + $0x174] sm:$0xf]
        %v1480 = vld [vmem:[%s311 + $0x178] sm:$0xf]
        %v1481 = vld [vmem:[%s311 + $0x17c] sm:$0xf]
        %v1498 = vunpack.c.l.b16 %v1466
        %v1499 = vunpack.c.l.b16 %v1467
        %v1500 = vunpack.c.l.b16 %v1468
        %v1501 = vunpack.c.l.b16 %v1469
        %v1502 = vunpack.c.l.b16 %v1470
        %v1503 = vunpack.c.l.b16 %v1471
        %v1504 = vunpack.c.l.b16 %v1472
        %v1505 = vunpack.c.l.b16 %v1473
        %v1506 = vunpack.c.l.b16 %v1474
        %v1507 = vunpack.c.l.b16 %v1475
        %v1508 = vunpack.c.l.b16 %v1476
        %v1509 = vunpack.c.l.b16 %v1477
        %v1510 = vunpack.c.l.b16 %v1478
        %v1511 = vunpack.c.l.b16 %v1479
        %v1512 = vunpack.c.l.b16 %v1480
        %v1513 = vunpack.c.l.b16 %v1481
        %v1514 = vpack.c.b16 %v1499, %v1498
        %v1515 = vpack.c.b16 %v1501, %v1500
        %v1516 = vpack.c.b16 %v1503, %v1502
        %v1517 = vpack.c.b16 %v1505, %v1504
        %v1518 = vpack.c.b16 %v1507, %v1506
        %v1519 = vpack.c.b16 %v1509, %v1508
        %v1520 = vpack.c.b16 %v1511, %v1510
        %v1521 = vpack.c.b16 %v1513, %v1512
        %1530 = vmatpush.bf16.msra.mxu0 %v1521
        %1531 = vmatpush.bf16.msra.mxu0 %v1520
        %1532 = vmatpush.bf16.msra.mxu0 %v1519
        %1533 = vmatpush.bf16.msra.mxu0 %v1518
        %1534 = vmatpush.bf16.msra.mxu0 %v1517
        %1535 = vmatpush.bf16.msra.mxu0 %v1516
        %1536 = vmatpush.bf16.msra.mxu0 %v1515
        %1537 = vmatpush.bf16.msra.mxu0 %v1514
        %1538 = vmatmul.bf16.gmra.mxu0 %v1450
        %v1539 = vpop.f32.mrf.mxu0
        %v1540 = vadd.f32 0.0, %v1539
        %v1541 = vpop.f32.mrf.mxu0
        %v1542 = vadd.f32 0.0, %v1541
        %1543 = vmatmul.bf16.gmra.mxu0 %v1451
        %v1544 = vpop.f32.mrf.mxu0
        %v1545 = vadd.f32 0.0, %v1544
        %v1546 = vpop.f32.mrf.mxu0
        %v1547 = vadd.f32 0.0, %v1546
        %1548 = vmatmul.bf16.gmra.mxu0 %v1452
        %v1549 = vpop.f32.mrf.mxu0
        %v1550 = vadd.f32 0.0, %v1549
        %v1551 = vpop.f32.mrf.mxu0
        %v1552 = vadd.f32 0.0, %v1551
        %1553 = vmatmul.bf16.gmra.mxu0 %v1453
        %v1554 = vpop.f32.mrf.mxu0
        %v1555 = vadd.f32 0.0, %v1554
        %v1556 = vpop.f32.mrf.mxu0
        %v1557 = vadd.f32 0.0, %v1556
        %1558 = vmatmul.bf16.gmra.mxu0 %v1454
        %v1559 = vpop.f32.mrf.mxu0
        %v1560 = vadd.f32 0.0, %v1559
        %v1561 = vpop.f32.mrf.mxu0
        %v1562 = vadd.f32 0.0, %v1561
        %1563 = vmatmul.bf16.gmra.mxu0 %v1455
        %v1564 = vpop.f32.mrf.mxu0
        %v1565 = vadd.f32 0.0, %v1564
        %v1566 = vpop.f32.mrf.mxu0
        %v1567 = vadd.f32 0.0, %v1566
        %1568 = vmatmul.bf16.gmra.mxu0 %v1456
        %v1569 = vpop.f32.mrf.mxu0
        %v1570 = vadd.f32 0.0, %v1569
        %v1571 = vpop.f32.mrf.mxu0
        %v1572 = vadd.f32 0.0, %v1571
        %1573 = vmatmul.bf16.gmra.mxu0 %v1457
        %v1574 = vpop.f32.mrf.mxu0
        %v1575 = vadd.f32 0.0, %v1574
        %v1576 = vpop.f32.mrf.mxu0
        %v1577 = vadd.f32 0.0, %v1576
        %1578 = vmatmul.bf16.gmra.mxu0 %v1458
        %v1579 = vpop.f32.mrf.mxu0
        %v1580 = vadd.f32 0.0, %v1579
        %v1581 = vpop.f32.mrf.mxu0
        %v1582 = vadd.f32 0.0, %v1581
        %1583 = vmatmul.bf16.gmra.mxu0 %v1459
        %v1584 = vpop.f32.mrf.mxu0
        %v1585 = vadd.f32 0.0, %v1584
        %v1586 = vpop.f32.mrf.mxu0
        %v1587 = vadd.f32 0.0, %v1586
        %1588 = vmatmul.bf16.gmra.mxu0 %v1460
        %v1589 = vpop.f32.mrf.mxu0
        %v1590 = vadd.f32 0.0, %v1589
        %v1591 = vpop.f32.mrf.mxu0
        %v1592 = vadd.f32 0.0, %v1591
        %1593 = vmatmul.bf16.gmra.mxu0 %v1461
        %v1594 = vpop.f32.mrf.mxu0
        %v1595 = vadd.f32 0.0, %v1594
        %v1596 = vpop.f32.mrf.mxu0
        %v1597 = vadd.f32 0.0, %v1596
        %1598 = vmatmul.bf16.gmra.mxu0 %v1462
        %v1599 = vpop.f32.mrf.mxu0
        %v1600 = vadd.f32 0.0, %v1599
        %v1601 = vpop.f32.mrf.mxu0
        %v1602 = vadd.f32 0.0, %v1601
        %1603 = vmatmul.bf16.gmra.mxu0 %v1463
        %v1604 = vpop.f32.mrf.mxu0
        %v1605 = vadd.f32 0.0, %v1604
        %v1606 = vpop.f32.mrf.mxu0
        %v1607 = vadd.f32 0.0, %v1606
        %1608 = vmatmul.bf16.gmra.mxu0 %v1464
        %v1609 = vpop.f32.mrf.mxu0
        %v1610 = vadd.f32 0.0, %v1609
        %v1611 = vpop.f32.mrf.mxu0
        %v1612 = vadd.f32 0.0, %v1611
        %1613 = vmatmul.bf16.gmra.mxu0 %v1465
        %v1614 = vpop.f32.mrf.mxu0
        %v1615 = vadd.f32 0.0, %v1614
        %v1616 = vpop.f32.mrf.mxu0
        %v1617 = vadd.f32 0.0, %v1616
        %1618 = vdwg.mxu0
        %v1619 = vadd.f32 %v1386, %v1540
        %v1620 = vadd.f32 %v1387, %v1542
        %v1621 = vadd.f32 %v1388, %v1545
        %v1622 = vadd.f32 %v1389, %v1547
        %v1623 = vadd.f32 %v1390, %v1550
        %v1624 = vadd.f32 %v1391, %v1552
        %v1625 = vadd.f32 %v1392, %v1555
        %v1626 = vadd.f32 %v1393, %v1557
        %v1627 = vadd.f32 %v1394, %v1560
        %v1628 = vadd.f32 %v1395, %v1562
        %v1629 = vadd.f32 %v1396, %v1565
        %v1630 = vadd.f32 %v1397, %v1567
        %v1631 = vadd.f32 %v1398, %v1570
        %v1632 = vadd.f32 %v1399, %v1572
        %v1633 = vadd.f32 %v1400, %v1575
        %v1634 = vadd.f32 %v1401, %v1577
        %v1635 = vadd.f32 %v1402, %v1580
        %v1636 = vadd.f32 %v1403, %v1582
        %v1637 = vadd.f32 %v1404, %v1585
        %v1638 = vadd.f32 %v1405, %v1587
        %v1639 = vadd.f32 %v1406, %v1590
        %v1640 = vadd.f32 %v1407, %v1592
        %v1641 = vadd.f32 %v1408, %v1595
        %v1642 = vadd.f32 %v1409, %v1597
        %v1643 = vadd.f32 %v1410, %v1600
        %v1644 = vadd.f32 %v1411, %v1602
        %v1645 = vadd.f32 %v1412, %v1605
        %v1646 = vadd.f32 %v1413, %v1607
        %v1647 = vadd.f32 %v1414, %v1610
        %v1648 = vadd.f32 %v1415, %v1612
        %v1649 = vadd.f32 %v1416, %v1615
        %v1650 = vadd.f32 %v1417, %v1617
        %s1651 = scalar_lea.vmem %s307, 48
        %v1652 = vld [vmem:[%s1651] sm:$0xff]
        %v1653 = vld [vmem:[%s1651 + $0x8] sm:$0xff]
        %v1654 = vld [vmem:[%s1651 + $0x18] sm:$0xff]
        %v1655 = vld [vmem:[%s1651 + $0x20] sm:$0xff]
        %v1656 = vld [vmem:[%s1651 + $0x30] sm:$0xff]
        %v1657 = vld [vmem:[%s1651 + $0x38] sm:$0xff]
        %v1658 = vld [vmem:[%s1651 + $0x48] sm:$0xff]
        %v1659 = vld [vmem:[%s1651 + $0x50] sm:$0xff]
        %v1660 = vld [vmem:[%s1651 + $0x60] sm:$0xff]
        %v1661 = vld [vmem:[%s1651 + $0x68] sm:$0xff]
        %v1662 = vld [vmem:[%s1651 + $0x78] sm:$0xff]
        %v1663 = vld [vmem:[%s1651 + $0x80] sm:$0xff]
        %v1664 = vld [vmem:[%s1651 + $0x90] sm:$0xff]
        %v1665 = vld [vmem:[%s1651 + $0x98] sm:$0xff]
        %v1666 = vld [vmem:[%s1651 + $0xa8] sm:$0xff]
        %v1667 = vld [vmem:[%s1651 + $0xb0] sm:$0xff]
        %v1668 = vld [vmem:[%s1651 + $0xc0] sm:$0xff]
        %v1669 = vld [vmem:[%s1651 + $0xc8] sm:$0xff]
        %v1670 = vld [vmem:[%s1651 + $0xd8] sm:$0xff]
        %v1671 = vld [vmem:[%s1651 + $0xe0] sm:$0xff]
        %v1672 = vld [vmem:[%s1651 + $0xf0] sm:$0xff]
        %v1673 = vld [vmem:[%s1651 + $0xf8] sm:$0xff]
        %v1674 = vld [vmem:[%s1651 + $0x108] sm:$0xff]
        %v1675 = vld [vmem:[%s1651 + $0x110] sm:$0xff]
        %v1676 = vld [vmem:[%s1651 + $0x120] sm:$0xff]
        %v1677 = vld [vmem:[%s1651 + $0x128] sm:$0xff]
        %v1678 = vld [vmem:[%s1651 + $0x138] sm:$0xff]
        %v1679 = vld [vmem:[%s1651 + $0x140] sm:$0xff]
        %v1680 = vld [vmem:[%s1651 + $0x150] sm:$0xff]
        %v1681 = vld [vmem:[%s1651 + $0x158] sm:$0xff]
        %v1682 = vld [vmem:[%s1651 + $0x168] sm:$0xff]
        %v1683 = vld [vmem:[%s1651 + $0x170] sm:$0xff]
        %v1684 = vpack.c.bf16 %v1653, %v1652
        %v1685 = vpack.c.bf16 %v1655, %v1654
        %v1686 = vpack.c.bf16 %v1657, %v1656
        %v1687 = vpack.c.bf16 %v1659, %v1658
        %v1688 = vpack.c.bf16 %v1661, %v1660
        %v1689 = vpack.c.bf16 %v1663, %v1662
        %v1690 = vpack.c.bf16 %v1665, %v1664
        %v1691 = vpack.c.bf16 %v1667, %v1666
        %v1692 = vpack.c.bf16 %v1669, %v1668
        %v1693 = vpack.c.bf16 %v1671, %v1670
        %v1694 = vpack.c.bf16 %v1673, %v1672
        %v1695 = vpack.c.bf16 %v1675, %v1674
        %v1696 = vpack.c.bf16 %v1677, %v1676
        %v1697 = vpack.c.bf16 %v1679, %v1678
        %v1698 = vpack.c.bf16 %v1681, %v1680
        %v1699 = vpack.c.bf16 %v1683, %v1682
        %v1700 = vld [vmem:[%s311 + $0x180] sm:$0xf]
        %v1701 = vld [vmem:[%s311 + $0x184] sm:$0xf]
        %v1702 = vld [vmem:[%s311 + $0x188] sm:$0xf]
        %v1703 = vld [vmem:[%s311 + $0x18c] sm:$0xf]
        %v1704 = vld [vmem:[%s311 + $0x190] sm:$0xf]
        %v1705 = vld [vmem:[%s311 + $0x194] sm:$0xf]
        %v1706 = vld [vmem:[%s311 + $0x198] sm:$0xf]
        %v1707 = vld [vmem:[%s311 + $0x19c] sm:$0xf]
        %v1708 = vld [vmem:[%s311 + $0x1a0] sm:$0xf]
        %v1709 = vld [vmem:[%s311 + $0x1a4] sm:$0xf]
        %v1710 = vld [vmem:[%s311 + $0x1a8] sm:$0xf]
        %v1711 = vld [vmem:[%s311 + $0x1ac] sm:$0xf]
        %v1712 = vld [vmem:[%s311 + $0x1b0] sm:$0xf]
        %v1713 = vld [vmem:[%s311 + $0x1b4] sm:$0xf]
        %v1714 = vld [vmem:[%s311 + $0x1b8] sm:$0xf]
        %v1715 = vld [vmem:[%s311 + $0x1bc] sm:$0xf]
        %v1732 = vunpack.c.l.b16 %v1700
        %v1733 = vunpack.c.l.b16 %v1701
        %v1734 = vunpack.c.l.b16 %v1702
        %v1735 = vunpack.c.l.b16 %v1703
        %v1736 = vunpack.c.l.b16 %v1704
        %v1737 = vunpack.c.l.b16 %v1705
        %v1738 = vunpack.c.l.b16 %v1706
        %v1739 = vunpack.c.l.b16 %v1707
        %v1740 = vunpack.c.l.b16 %v1708
        %v1741 = vunpack.c.l.b16 %v1709
        %v1742 = vunpack.c.l.b16 %v1710
        %v1743 = vunpack.c.l.b16 %v1711
        %v1744 = vunpack.c.l.b16 %v1712
        %v1745 = vunpack.c.l.b16 %v1713
        %v1746 = vunpack.c.l.b16 %v1714
        %v1747 = vunpack.c.l.b16 %v1715
        %v1748 = vpack.c.b16 %v1733, %v1732
        %v1749 = vpack.c.b16 %v1735, %v1734
        %v1750 = vpack.c.b16 %v1737, %v1736
        %v1751 = vpack.c.b16 %v1739, %v1738
        %v1752 = vpack.c.b16 %v1741, %v1740
        %v1753 = vpack.c.b16 %v1743, %v1742
        %v1754 = vpack.c.b16 %v1745, %v1744
        %v1755 = vpack.c.b16 %v1747, %v1746
        %1764 = vmatpush.bf16.msra.mxu0 %v1755
        %1765 = vmatpush.bf16.msra.mxu0 %v1754
        %1766 = vmatpush.bf16.msra.mxu0 %v1753
        %1767 = vmatpush.bf16.msra.mxu0 %v1752
        %1768 = vmatpush.bf16.msra.mxu0 %v1751
        %1769 = vmatpush.bf16.msra.mxu0 %v1750
        %1770 = vmatpush.bf16.msra.mxu0 %v1749
        %1771 = vmatpush.bf16.msra.mxu0 %v1748
        %1772 = vmatmul.bf16.gmra.mxu0 %v1684
        %v1773 = vpop.f32.mrf.mxu0
        %v1774 = vadd.f32 0.0, %v1773
        %v1775 = vpop.f32.mrf.mxu0
        %v1776 = vadd.f32 0.0, %v1775
        %1777 = vmatmul.bf16.gmra.mxu0 %v1685
        %v1778 = vpop.f32.mrf.mxu0
        %v1779 = vadd.f32 0.0, %v1778
        %v1780 = vpop.f32.mrf.mxu0
        %v1781 = vadd.f32 0.0, %v1780
        %1782 = vmatmul.bf16.gmra.mxu0 %v1686
        %v1783 = vpop.f32.mrf.mxu0
        %v1784 = vadd.f32 0.0, %v1783
        %v1785 = vpop.f32.mrf.mxu0
        %v1786 = vadd.f32 0.0, %v1785
        %1787 = vmatmul.bf16.gmra.mxu0 %v1687
        %v1788 = vpop.f32.mrf.mxu0
        %v1789 = vadd.f32 0.0, %v1788
        %v1790 = vpop.f32.mrf.mxu0
        %v1791 = vadd.f32 0.0, %v1790
        %1792 = vmatmul.bf16.gmra.mxu0 %v1688
        %v1793 = vpop.f32.mrf.mxu0
        %v1794 = vadd.f32 0.0, %v1793
        %v1795 = vpop.f32.mrf.mxu0
        %v1796 = vadd.f32 0.0, %v1795
        %1797 = vmatmul.bf16.gmra.mxu0 %v1689
        %v1798 = vpop.f32.mrf.mxu0
        %v1799 = vadd.f32 0.0, %v1798
        %v1800 = vpop.f32.mrf.mxu0
        %v1801 = vadd.f32 0.0, %v1800
        %1802 = vmatmul.bf16.gmra.mxu0 %v1690
        %v1803 = vpop.f32.mrf.mxu0
        %v1804 = vadd.f32 0.0, %v1803
        %v1805 = vpop.f32.mrf.mxu0
        %v1806 = vadd.f32 0.0, %v1805
        %1807 = vmatmul.bf16.gmra.mxu0 %v1691
        %v1808 = vpop.f32.mrf.mxu0
        %v1809 = vadd.f32 0.0, %v1808
        %v1810 = vpop.f32.mrf.mxu0
        %v1811 = vadd.f32 0.0, %v1810
        %1812 = vmatmul.bf16.gmra.mxu0 %v1692
        %v1813 = vpop.f32.mrf.mxu0
        %v1814 = vadd.f32 0.0, %v1813
        %v1815 = vpop.f32.mrf.mxu0
        %v1816 = vadd.f32 0.0, %v1815
        %1817 = vmatmul.bf16.gmra.mxu0 %v1693
        %v1818 = vpop.f32.mrf.mxu0
        %v1819 = vadd.f32 0.0, %v1818
        %v1820 = vpop.f32.mrf.mxu0
        %v1821 = vadd.f32 0.0, %v1820
        %1822 = vmatmul.bf16.gmra.mxu0 %v1694
        %v1823 = vpop.f32.mrf.mxu0
        %v1824 = vadd.f32 0.0, %v1823
        %v1825 = vpop.f32.mrf.mxu0
        %v1826 = vadd.f32 0.0, %v1825
        %1827 = vmatmul.bf16.gmra.mxu0 %v1695
        %v1828 = vpop.f32.mrf.mxu0
        %v1829 = vadd.f32 0.0, %v1828
        %v1830 = vpop.f32.mrf.mxu0
        %v1831 = vadd.f32 0.0, %v1830
        %1832 = vmatmul.bf16.gmra.mxu0 %v1696
        %v1833 = vpop.f32.mrf.mxu0
        %v1834 = vadd.f32 0.0, %v1833
        %v1835 = vpop.f32.mrf.mxu0
        %v1836 = vadd.f32 0.0, %v1835
        %1837 = vmatmul.bf16.gmra.mxu0 %v1697
        %v1838 = vpop.f32.mrf.mxu0
        %v1839 = vadd.f32 0.0, %v1838
        %v1840 = vpop.f32.mrf.mxu0
        %v1841 = vadd.f32 0.0, %v1840
        %1842 = vmatmul.bf16.gmra.mxu0 %v1698
        %v1843 = vpop.f32.mrf.mxu0
        %v1844 = vadd.f32 0.0, %v1843
        %v1845 = vpop.f32.mrf.mxu0
        %v1846 = vadd.f32 0.0, %v1845
        %1847 = vmatmul.bf16.gmra.mxu0 %v1699
        %v1848 = vpop.f32.mrf.mxu0
        %v1849 = vadd.f32 0.0, %v1848
        %v1850 = vpop.f32.mrf.mxu0
        %v1851 = vadd.f32 0.0, %v1850
        %1852 = vdwg.mxu0
        %v1853 = vadd.f32 %v1619, %v1774
        %v1854 = vadd.f32 %v1620, %v1776
        %v1855 = vadd.f32 %v1621, %v1779
        %v1856 = vadd.f32 %v1622, %v1781
        %v1857 = vadd.f32 %v1623, %v1784
        %v1858 = vadd.f32 %v1624, %v1786
        %v1859 = vadd.f32 %v1625, %v1789
        %v1860 = vadd.f32 %v1626, %v1791
        %v1861 = vadd.f32 %v1627, %v1794
        %v1862 = vadd.f32 %v1628, %v1796
        %v1863 = vadd.f32 %v1629, %v1799
        %v1864 = vadd.f32 %v1630, %v1801
        %v1865 = vadd.f32 %v1631, %v1804
        %v1866 = vadd.f32 %v1632, %v1806
        %v1867 = vadd.f32 %v1633, %v1809
        %v1868 = vadd.f32 %v1634, %v1811
        %v1869 = vadd.f32 %v1635, %v1814
        %v1870 = vadd.f32 %v1636, %v1816
        %v1871 = vadd.f32 %v1637, %v1819
        %v1872 = vadd.f32 %v1638, %v1821
        %v1873 = vadd.f32 %v1639, %v1824
        %v1874 = vadd.f32 %v1640, %v1826
        %v1875 = vadd.f32 %v1641, %v1829
        %v1876 = vadd.f32 %v1642, %v1831
        %v1877 = vadd.f32 %v1643, %v1834
        %v1878 = vadd.f32 %v1644, %v1836
        %v1879 = vadd.f32 %v1645, %v1839
        %v1880 = vadd.f32 %v1646, %v1841
        %v1881 = vadd.f32 %v1647, %v1844
        %v1882 = vadd.f32 %v1648, %v1846
        %v1883 = vadd.f32 %v1649, %v1849
        %v1884 = vadd.f32 %v1650, %v1851
        %v1885 = vld [vmem:[%s1651 + $0x1] sm:$0xff]
        %v1886 = vld [vmem:[%s1651 + $0x9] sm:$0xff]
        %v1887 = vld [vmem:[%s1651 + $0x19] sm:$0xff]
        %v1888 = vld [vmem:[%s1651 + $0x21] sm:$0xff]
        %v1889 = vld [vmem:[%s1651 + $0x31] sm:$0xff]
        %v1890 = vld [vmem:[%s1651 + $0x39] sm:$0xff]
        %v1891 = vld [vmem:[%s1651 + $0x49] sm:$0xff]
        %v1892 = vld [vmem:[%s1651 + $0x51] sm:$0xff]
        %v1893 = vld [vmem:[%s1651 + $0x61] sm:$0xff]
        %v1894 = vld [vmem:[%s1651 + $0x69] sm:$0xff]
        %v1895 = vld [vmem:[%s1651 + $0x79] sm:$0xff]
        %v1896 = vld [vmem:[%s1651 + $0x81] sm:$0xff]
        %v1897 = vld [vmem:[%s1651 + $0x91] sm:$0xff]
        %v1898 = vld [vmem:[%s1651 + $0x99] sm:$0xff]
        %v1899 = vld [vmem:[%s1651 + $0xa9] sm:$0xff]
        %v1900 = vld [vmem:[%s1651 + $0xb1] sm:$0xff]
        %v1901 = vld [vmem:[%s1651 + $0xc1] sm:$0xff]
        %v1902 = vld [vmem:[%s1651 + $0xc9] sm:$0xff]
        %v1903 = vld [vmem:[%s1651 + $0xd9] sm:$0xff]
        %v1904 = vld [vmem:[%s1651 + $0xe1] sm:$0xff]
        %v1905 = vld [vmem:[%s1651 + $0xf1] sm:$0xff]
        %v1906 = vld [vmem:[%s1651 + $0xf9] sm:$0xff]
        %v1907 = vld [vmem:[%s1651 + $0x109] sm:$0xff]
        %v1908 = vld [vmem:[%s1651 + $0x111] sm:$0xff]
        %v1909 = vld [vmem:[%s1651 + $0x121] sm:$0xff]
        %v1910 = vld [vmem:[%s1651 + $0x129] sm:$0xff]
        %v1911 = vld [vmem:[%s1651 + $0x139] sm:$0xff]
        %v1912 = vld [vmem:[%s1651 + $0x141] sm:$0xff]
        %v1913 = vld [vmem:[%s1651 + $0x151] sm:$0xff]
        %v1914 = vld [vmem:[%s1651 + $0x159] sm:$0xff]
        %v1915 = vld [vmem:[%s1651 + $0x169] sm:$0xff]
        %v1916 = vld [vmem:[%s1651 + $0x171] sm:$0xff]
        %v1917 = vpack.c.bf16 %v1886, %v1885
        %v1918 = vpack.c.bf16 %v1888, %v1887
        %v1919 = vpack.c.bf16 %v1890, %v1889
        %v1920 = vpack.c.bf16 %v1892, %v1891
        %v1921 = vpack.c.bf16 %v1894, %v1893
        %v1922 = vpack.c.bf16 %v1896, %v1895
        %v1923 = vpack.c.bf16 %v1898, %v1897
        %v1924 = vpack.c.bf16 %v1900, %v1899
        %v1925 = vpack.c.bf16 %v1902, %v1901
        %v1926 = vpack.c.bf16 %v1904, %v1903
        %v1927 = vpack.c.bf16 %v1906, %v1905
        %v1928 = vpack.c.bf16 %v1908, %v1907
        %v1929 = vpack.c.bf16 %v1910, %v1909
        %v1930 = vpack.c.bf16 %v1912, %v1911
        %v1931 = vpack.c.bf16 %v1914, %v1913
        %v1932 = vpack.c.bf16 %v1916, %v1915
        %v1933 = vld [vmem:[%s311 + $0x1c0] sm:$0xf]
        %v1934 = vld [vmem:[%s311 + $0x1c4] sm:$0xf]
        %v1935 = vld [vmem:[%s311 + $0x1c8] sm:$0xf]
        %v1936 = vld [vmem:[%s311 + $0x1cc] sm:$0xf]
        %v1937 = vld [vmem:[%s311 + $0x1d0] sm:$0xf]
        %v1938 = vld [vmem:[%s311 + $0x1d4] sm:$0xf]
        %v1939 = vld [vmem:[%s311 + $0x1d8] sm:$0xf]
        %v1940 = vld [vmem:[%s311 + $0x1dc] sm:$0xf]
        %v1941 = vld [vmem:[%s311 + $0x1e0] sm:$0xf]
        %v1942 = vld [vmem:[%s311 + $0x1e4] sm:$0xf]
        %v1943 = vld [vmem:[%s311 + $0x1e8] sm:$0xf]
        %v1944 = vld [vmem:[%s311 + $0x1ec] sm:$0xf]
        %v1945 = vld [vmem:[%s311 + $0x1f0] sm:$0xf]
        %v1946 = vld [vmem:[%s311 + $0x1f4] sm:$0xf]
        %v1947 = vld [vmem:[%s311 + $0x1f8] sm:$0xf]
        %v1948 = vld [vmem:[%s311 + $0x1fc] sm:$0xf]
        %v1965 = vunpack.c.l.b16 %v1933
        %v1966 = vunpack.c.l.b16 %v1934
        %v1967 = vunpack.c.l.b16 %v1935
        %v1968 = vunpack.c.l.b16 %v1936
        %v1969 = vunpack.c.l.b16 %v1937
        %v1970 = vunpack.c.l.b16 %v1938
        %v1971 = vunpack.c.l.b16 %v1939
        %v1972 = vunpack.c.l.b16 %v1940
        %v1973 = vunpack.c.l.b16 %v1941
        %v1974 = vunpack.c.l.b16 %v1942
        %v1975 = vunpack.c.l.b16 %v1943
        %v1976 = vunpack.c.l.b16 %v1944
        %v1977 = vunpack.c.l.b16 %v1945
        %v1978 = vunpack.c.l.b16 %v1946
        %v1979 = vunpack.c.l.b16 %v1947
        %v1980 = vunpack.c.l.b16 %v1948
        %v1981 = vpack.c.b16 %v1966, %v1965
        %v1982 = vpack.c.b16 %v1968, %v1967
        %v1983 = vpack.c.b16 %v1970, %v1969
        %v1984 = vpack.c.b16 %v1972, %v1971
        %v1985 = vpack.c.b16 %v1974, %v1973
        %v1986 = vpack.c.b16 %v1976, %v1975
        %v1987 = vpack.c.b16 %v1978, %v1977
        %v1988 = vpack.c.b16 %v1980, %v1979
        %1997 = vmatpush.bf16.msra.mxu0 %v1988
        %1998 = vmatpush.bf16.msra.mxu0 %v1987
        %1999 = vmatpush.bf16.msra.mxu0 %v1986
        %2000 = vmatpush.bf16.msra.mxu0 %v1985
        %2001 = vmatpush.bf16.msra.mxu0 %v1984
        %2002 = vmatpush.bf16.msra.mxu0 %v1983
        %2003 = vmatpush.bf16.msra.mxu0 %v1982
        %2004 = vmatpush.bf16.msra.mxu0 %v1981
        %2005 = vmatmul.bf16.gmra.mxu0 %v1917
        %v2006 = vpop.f32.mrf.mxu0
        %v2007 = vadd.f32 0.0, %v2006
        %v2008 = vpop.f32.mrf.mxu0
        %v2009 = vadd.f32 0.0, %v2008
        %2010 = vmatmul.bf16.gmra.mxu0 %v1918
        %v2011 = vpop.f32.mrf.mxu0
        %v2012 = vadd.f32 0.0, %v2011
        %v2013 = vpop.f32.mrf.mxu0
        %v2014 = vadd.f32 0.0, %v2013
        %2015 = vmatmul.bf16.gmra.mxu0 %v1919
        %v2016 = vpop.f32.mrf.mxu0
        %v2017 = vadd.f32 0.0, %v2016
        %v2018 = vpop.f32.mrf.mxu0
        %v2019 = vadd.f32 0.0, %v2018
        %2020 = vmatmul.bf16.gmra.mxu0 %v1920
        %v2021 = vpop.f32.mrf.mxu0
        %v2022 = vadd.f32 0.0, %v2021
        %v2023 = vpop.f32.mrf.mxu0
        %v2024 = vadd.f32 0.0, %v2023
        %2025 = vmatmul.bf16.gmra.mxu0 %v1921
        %v2026 = vpop.f32.mrf.mxu0
        %v2027 = vadd.f32 0.0, %v2026
        %v2028 = vpop.f32.mrf.mxu0
        %v2029 = vadd.f32 0.0, %v2028
        %2030 = vmatmul.bf16.gmra.mxu0 %v1922
        %v2031 = vpop.f32.mrf.mxu0
        %v2032 = vadd.f32 0.0, %v2031
        %v2033 = vpop.f32.mrf.mxu0
        %v2034 = vadd.f32 0.0, %v2033
        %2035 = vmatmul.bf16.gmra.mxu0 %v1923
        %v2036 = vpop.f32.mrf.mxu0
        %v2037 = vadd.f32 0.0, %v2036
        %v2038 = vpop.f32.mrf.mxu0
        %v2039 = vadd.f32 0.0, %v2038
        %2040 = vmatmul.bf16.gmra.mxu0 %v1924
        %v2041 = vpop.f32.mrf.mxu0
        %v2042 = vadd.f32 0.0, %v2041
        %v2043 = vpop.f32.mrf.mxu0
        %v2044 = vadd.f32 0.0, %v2043
        %2045 = vmatmul.bf16.gmra.mxu0 %v1925
        %v2046 = vpop.f32.mrf.mxu0
        %v2047 = vadd.f32 0.0, %v2046
        %v2048 = vpop.f32.mrf.mxu0
        %v2049 = vadd.f32 0.0, %v2048
        %2050 = vmatmul.bf16.gmra.mxu0 %v1926
        %v2051 = vpop.f32.mrf.mxu0
        %v2052 = vadd.f32 0.0, %v2051
        %v2053 = vpop.f32.mrf.mxu0
        %v2054 = vadd.f32 0.0, %v2053
        %2055 = vmatmul.bf16.gmra.mxu0 %v1927
        %v2056 = vpop.f32.mrf.mxu0
        %v2057 = vadd.f32 0.0, %v2056
        %v2058 = vpop.f32.mrf.mxu0
        %v2059 = vadd.f32 0.0, %v2058
        %2060 = vmatmul.bf16.gmra.mxu0 %v1928
        %v2061 = vpop.f32.mrf.mxu0
        %v2062 = vadd.f32 0.0, %v2061
        %v2063 = vpop.f32.mrf.mxu0
        %v2064 = vadd.f32 0.0, %v2063
        %2065 = vmatmul.bf16.gmra.mxu0 %v1929
        %v2066 = vpop.f32.mrf.mxu0
        %v2067 = vadd.f32 0.0, %v2066
        %v2068 = vpop.f32.mrf.mxu0
        %v2069 = vadd.f32 0.0, %v2068
        %2070 = vmatmul.bf16.gmra.mxu0 %v1930
        %v2071 = vpop.f32.mrf.mxu0
        %v2072 = vadd.f32 0.0, %v2071
        %v2073 = vpop.f32.mrf.mxu0
        %v2074 = vadd.f32 0.0, %v2073
        %2075 = vmatmul.bf16.gmra.mxu0 %v1931
        %v2076 = vpop.f32.mrf.mxu0
        %v2077 = vadd.f32 0.0, %v2076
        %v2078 = vpop.f32.mrf.mxu0
        %v2079 = vadd.f32 0.0, %v2078
        %2080 = vmatmul.bf16.gmra.mxu0 %v1932
        %v2081 = vpop.f32.mrf.mxu0
        %v2082 = vadd.f32 0.0, %v2081
        %v2083 = vpop.f32.mrf.mxu0
        %v2084 = vadd.f32 0.0, %v2083
        %2085 = vdwg.mxu0
        %v2086 = vadd.f32 %v1853, %v2007
        %v2087 = vadd.f32 %v1854, %v2009
        %v2088 = vadd.f32 %v1855, %v2012
        %v2089 = vadd.f32 %v1856, %v2014
        %v2090 = vadd.f32 %v1857, %v2017
        %v2091 = vadd.f32 %v1858, %v2019
        %v2092 = vadd.f32 %v1859, %v2022
        %v2093 = vadd.f32 %v1860, %v2024
        %v2094 = vadd.f32 %v1861, %v2027
        %v2095 = vadd.f32 %v1862, %v2029
        %v2096 = vadd.f32 %v1863, %v2032
        %v2097 = vadd.f32 %v1864, %v2034
        %v2098 = vadd.f32 %v1865, %v2037
        %v2099 = vadd.f32 %v1866, %v2039
        %v2100 = vadd.f32 %v1867, %v2042
        %v2101 = vadd.f32 %v1868, %v2044
        %v2102 = vadd.f32 %v1869, %v2047
        %v2103 = vadd.f32 %v1870, %v2049
        %v2104 = vadd.f32 %v1871, %v2052
        %v2105 = vadd.f32 %v1872, %v2054
        %v2106 = vadd.f32 %v1873, %v2057
        %v2107 = vadd.f32 %v1874, %v2059
        %v2108 = vadd.f32 %v1875, %v2062
        %v2109 = vadd.f32 %v1876, %v2064
        %v2110 = vadd.f32 %v1877, %v2067
        %v2111 = vadd.f32 %v1878, %v2069
        %v2112 = vadd.f32 %v1879, %v2072
        %v2113 = vadd.f32 %v1880, %v2074
        %v2114 = vadd.f32 %v1881, %v2077
        %v2115 = vadd.f32 %v1882, %v2079
        %v2116 = vadd.f32 %v1883, %v2082
        %v2117 = vadd.f32 %v1884, %v2084
        %v2118 = vld [vmem:[%s1651 + $0x2] sm:$0xff]
        %v2119 = vld [vmem:[%s1651 + $0xa] sm:$0xff]
        %v2120 = vld [vmem:[%s1651 + $0x1a] sm:$0xff]
        %v2121 = vld [vmem:[%s1651 + $0x22] sm:$0xff]
        %v2122 = vld [vmem:[%s1651 + $0x32] sm:$0xff]
        %v2123 = vld [vmem:[%s1651 + $0x3a] sm:$0xff]
        %v2124 = vld [vmem:[%s1651 + $0x4a] sm:$0xff]
        %v2125 = vld [vmem:[%s1651 + $0x52] sm:$0xff]
        %v2126 = vld [vmem:[%s1651 + $0x62] sm:$0xff]
        %v2127 = vld [vmem:[%s1651 + $0x6a] sm:$0xff]
        %v2128 = vld [vmem:[%s1651 + $0x7a] sm:$0xff]
        %v2129 = vld [vmem:[%s1651 + $0x82] sm:$0xff]
        %v2130 = vld [vmem:[%s1651 + $0x92] sm:$0xff]
        %v2131 = vld [vmem:[%s1651 + $0x9a] sm:$0xff]
        %v2132 = vld [vmem:[%s1651 + $0xaa] sm:$0xff]
        %v2133 = vld [vmem:[%s1651 + $0xb2] sm:$0xff]
        %v2134 = vld [vmem:[%s1651 + $0xc2] sm:$0xff]
        %v2135 = vld [vmem:[%s1651 + $0xca] sm:$0xff]
        %v2136 = vld [vmem:[%s1651 + $0xda] sm:$0xff]
        %v2137 = vld [vmem:[%s1651 + $0xe2] sm:$0xff]
        %v2138 = vld [vmem:[%s1651 + $0xf2] sm:$0xff]
        %v2139 = vld [vmem:[%s1651 + $0xfa] sm:$0xff]
        %v2140 = vld [vmem:[%s1651 + $0x10a] sm:$0xff]
        %v2141 = vld [vmem:[%s1651 + $0x112] sm:$0xff]
        %v2142 = vld [vmem:[%s1651 + $0x122] sm:$0xff]
        %v2143 = vld [vmem:[%s1651 + $0x12a] sm:$0xff]
        %v2144 = vld [vmem:[%s1651 + $0x13a] sm:$0xff]
        %v2145 = vld [vmem:[%s1651 + $0x142] sm:$0xff]
        %v2146 = vld [vmem:[%s1651 + $0x152] sm:$0xff]
        %v2147 = vld [vmem:[%s1651 + $0x15a] sm:$0xff]
        %v2148 = vld [vmem:[%s1651 + $0x16a] sm:$0xff]
        %v2149 = vld [vmem:[%s1651 + $0x172] sm:$0xff]
        %v2150 = vpack.c.bf16 %v2119, %v2118
        %v2151 = vpack.c.bf16 %v2121, %v2120
        %v2152 = vpack.c.bf16 %v2123, %v2122
        %v2153 = vpack.c.bf16 %v2125, %v2124
        %v2154 = vpack.c.bf16 %v2127, %v2126
        %v2155 = vpack.c.bf16 %v2129, %v2128
        %v2156 = vpack.c.bf16 %v2131, %v2130
        %v2157 = vpack.c.bf16 %v2133, %v2132
        %v2158 = vpack.c.bf16 %v2135, %v2134
        %v2159 = vpack.c.bf16 %v2137, %v2136
        %v2160 = vpack.c.bf16 %v2139, %v2138
        %v2161 = vpack.c.bf16 %v2141, %v2140
        %v2162 = vpack.c.bf16 %v2143, %v2142
        %v2163 = vpack.c.bf16 %v2145, %v2144
        %v2164 = vpack.c.bf16 %v2147, %v2146
        %v2165 = vpack.c.bf16 %v2149, %v2148
        %v2166 = vld [vmem:[%s311 + $0x200] sm:$0xf]
        %v2167 = vld [vmem:[%s311 + $0x204] sm:$0xf]
        %v2168 = vld [vmem:[%s311 + $0x208] sm:$0xf]
        %v2169 = vld [vmem:[%s311 + $0x20c] sm:$0xf]
        %v2170 = vld [vmem:[%s311 + $0x210] sm:$0xf]
        %v2171 = vld [vmem:[%s311 + $0x214] sm:$0xf]
        %v2172 = vld [vmem:[%s311 + $0x218] sm:$0xf]
        %v2173 = vld [vmem:[%s311 + $0x21c] sm:$0xf]
        %v2174 = vld [vmem:[%s311 + $0x220] sm:$0xf]
        %v2175 = vld [vmem:[%s311 + $0x224] sm:$0xf]
        %v2176 = vld [vmem:[%s311 + $0x228] sm:$0xf]
        %v2177 = vld [vmem:[%s311 + $0x22c] sm:$0xf]
        %v2178 = vld [vmem:[%s311 + $0x230] sm:$0xf]
        %v2179 = vld [vmem:[%s311 + $0x234] sm:$0xf]
        %v2180 = vld [vmem:[%s311 + $0x238] sm:$0xf]
        %v2181 = vld [vmem:[%s311 + $0x23c] sm:$0xf]
        %v2198 = vunpack.c.l.b16 %v2166
        %v2199 = vunpack.c.l.b16 %v2167
        %v2200 = vunpack.c.l.b16 %v2168
        %v2201 = vunpack.c.l.b16 %v2169
        %v2202 = vunpack.c.l.b16 %v2170
        %v2203 = vunpack.c.l.b16 %v2171
        %v2204 = vunpack.c.l.b16 %v2172
        %v2205 = vunpack.c.l.b16 %v2173
        %v2206 = vunpack.c.l.b16 %v2174
        %v2207 = vunpack.c.l.b16 %v2175
        %v2208 = vunpack.c.l.b16 %v2176
        %v2209 = vunpack.c.l.b16 %v2177
        %v2210 = vunpack.c.l.b16 %v2178
        %v2211 = vunpack.c.l.b16 %v2179
        %v2212 = vunpack.c.l.b16 %v2180
        %v2213 = vunpack.c.l.b16 %v2181
        %v2214 = vpack.c.b16 %v2199, %v2198
        %v2215 = vpack.c.b16 %v2201, %v2200
        %v2216 = vpack.c.b16 %v2203, %v2202
        %v2217 = vpack.c.b16 %v2205, %v2204
        %v2218 = vpack.c.b16 %v2207, %v2206
        %v2219 = vpack.c.b16 %v2209, %v2208
        %v2220 = vpack.c.b16 %v2211, %v2210
        %v2221 = vpack.c.b16 %v2213, %v2212
        %2230 = vmatpush.bf16.msra.mxu0 %v2221
        %2231 = vmatpush.bf16.msra.mxu0 %v2220
        %2232 = vmatpush.bf16.msra.mxu0 %v2219
        %2233 = vmatpush.bf16.msra.mxu0 %v2218
        %2234 = vmatpush.bf16.msra.mxu0 %v2217
        %2235 = vmatpush.bf16.msra.mxu0 %v2216
        %2236 = vmatpush.bf16.msra.mxu0 %v2215
        %2237 = vmatpush.bf16.msra.mxu0 %v2214
        %2238 = vmatmul.bf16.gmra.mxu0 %v2150
        %v2239 = vpop.f32.mrf.mxu0
        %v2240 = vadd.f32 0.0, %v2239
        %v2241 = vpop.f32.mrf.mxu0
        %v2242 = vadd.f32 0.0, %v2241
        %2243 = vmatmul.bf16.gmra.mxu0 %v2151
        %v2244 = vpop.f32.mrf.mxu0
        %v2245 = vadd.f32 0.0, %v2244
        %v2246 = vpop.f32.mrf.mxu0
        %v2247 = vadd.f32 0.0, %v2246
        %2248 = vmatmul.bf16.gmra.mxu0 %v2152
        %v2249 = vpop.f32.mrf.mxu0
        %v2250 = vadd.f32 0.0, %v2249
        %v2251 = vpop.f32.mrf.mxu0
        %v2252 = vadd.f32 0.0, %v2251
        %2253 = vmatmul.bf16.gmra.mxu0 %v2153
        %v2254 = vpop.f32.mrf.mxu0
        %v2255 = vadd.f32 0.0, %v2254
        %v2256 = vpop.f32.mrf.mxu0
        %v2257 = vadd.f32 0.0, %v2256
        %2258 = vmatmul.bf16.gmra.mxu0 %v2154
        %v2259 = vpop.f32.mrf.mxu0
        %v2260 = vadd.f32 0.0, %v2259
        %v2261 = vpop.f32.mrf.mxu0
        %v2262 = vadd.f32 0.0, %v2261
        %2263 = vmatmul.bf16.gmra.mxu0 %v2155
        %v2264 = vpop.f32.mrf.mxu0
        %v2265 = vadd.f32 0.0, %v2264
        %v2266 = vpop.f32.mrf.mxu0
        %v2267 = vadd.f32 0.0, %v2266
        %2268 = vmatmul.bf16.gmra.mxu0 %v2156
        %v2269 = vpop.f32.mrf.mxu0
        %v2270 = vadd.f32 0.0, %v2269
        %v2271 = vpop.f32.mrf.mxu0
        %v2272 = vadd.f32 0.0, %v2271
        %2273 = vmatmul.bf16.gmra.mxu0 %v2157
        %v2274 = vpop.f32.mrf.mxu0
        %v2275 = vadd.f32 0.0, %v2274
        %v2276 = vpop.f32.mrf.mxu0
        %v2277 = vadd.f32 0.0, %v2276
        %2278 = vmatmul.bf16.gmra.mxu0 %v2158
        %v2279 = vpop.f32.mrf.mxu0
        %v2280 = vadd.f32 0.0, %v2279
        %v2281 = vpop.f32.mrf.mxu0
        %v2282 = vadd.f32 0.0, %v2281
        %2283 = vmatmul.bf16.gmra.mxu0 %v2159
        %v2284 = vpop.f32.mrf.mxu0
        %v2285 = vadd.f32 0.0, %v2284
        %v2286 = vpop.f32.mrf.mxu0
        %v2287 = vadd.f32 0.0, %v2286
        %2288 = vmatmul.bf16.gmra.mxu0 %v2160
        %v2289 = vpop.f32.mrf.mxu0
        %v2290 = vadd.f32 0.0, %v2289
        %v2291 = vpop.f32.mrf.mxu0
        %v2292 = vadd.f32 0.0, %v2291
        %2293 = vmatmul.bf16.gmra.mxu0 %v2161
        %v2294 = vpop.f32.mrf.mxu0
        %v2295 = vadd.f32 0.0, %v2294
        %v2296 = vpop.f32.mrf.mxu0
        %v2297 = vadd.f32 0.0, %v2296
        %2298 = vmatmul.bf16.gmra.mxu0 %v2162
        %v2299 = vpop.f32.mrf.mxu0
        %v2300 = vadd.f32 0.0, %v2299
        %v2301 = vpop.f32.mrf.mxu0
        %v2302 = vadd.f32 0.0, %v2301
        %2303 = vmatmul.bf16.gmra.mxu0 %v2163
        %v2304 = vpop.f32.mrf.mxu0
        %v2305 = vadd.f32 0.0, %v2304
        %v2306 = vpop.f32.mrf.mxu0
        %v2307 = vadd.f32 0.0, %v2306
        %2308 = vmatmul.bf16.gmra.mxu0 %v2164
        %v2309 = vpop.f32.mrf.mxu0
        %v2310 = vadd.f32 0.0, %v2309
        %v2311 = vpop.f32.mrf.mxu0
        %v2312 = vadd.f32 0.0, %v2311
        %2313 = vmatmul.bf16.gmra.mxu0 %v2165
        %v2314 = vpop.f32.mrf.mxu0
        %v2315 = vadd.f32 0.0, %v2314
        %v2316 = vpop.f32.mrf.mxu0
        %v2317 = vadd.f32 0.0, %v2316
        %2318 = vdwg.mxu0
        %v2319 = vadd.f32 %v2086, %v2240
        %v2320 = vadd.f32 %v2087, %v2242
        %v2321 = vadd.f32 %v2088, %v2245
        %v2322 = vadd.f32 %v2089, %v2247
        %v2323 = vadd.f32 %v2090, %v2250
        %v2324 = vadd.f32 %v2091, %v2252
        %v2325 = vadd.f32 %v2092, %v2255
        %v2326 = vadd.f32 %v2093, %v2257
        %v2327 = vadd.f32 %v2094, %v2260
        %v2328 = vadd.f32 %v2095, %v2262
        %v2329 = vadd.f32 %v2096, %v2265
        %v2330 = vadd.f32 %v2097, %v2267
        %v2331 = vadd.f32 %v2098, %v2270
        %v2332 = vadd.f32 %v2099, %v2272
        %v2333 = vadd.f32 %v2100, %v2275
        %v2334 = vadd.f32 %v2101, %v2277
        %v2335 = vadd.f32 %v2102, %v2280
        %v2336 = vadd.f32 %v2103, %v2282
        %v2337 = vadd.f32 %v2104, %v2285
        %v2338 = vadd.f32 %v2105, %v2287
        %v2339 = vadd.f32 %v2106, %v2290
        %v2340 = vadd.f32 %v2107, %v2292
        %v2341 = vadd.f32 %v2108, %v2295
        %v2342 = vadd.f32 %v2109, %v2297
        %v2343 = vadd.f32 %v2110, %v2300
        %v2344 = vadd.f32 %v2111, %v2302
        %v2345 = vadd.f32 %v2112, %v2305
        %v2346 = vadd.f32 %v2113, %v2307
        %v2347 = vadd.f32 %v2114, %v2310
        %v2348 = vadd.f32 %v2115, %v2312
        %v2349 = vadd.f32 %v2116, %v2315
        %v2350 = vadd.f32 %v2117, %v2317
        %v2352 = vperm.slane %v315, 0
        %v2354 = vadd.f32 %v2319, %v2352
        %v2355 = vadd.f32 %v2320, %v2352
        %v2356 = vadd.f32 %v2321, %v2352
        %v2357 = vadd.f32 %v2322, %v2352
        %v2358 = vadd.f32 %v2323, %v2352
        %v2359 = vadd.f32 %v2324, %v2352
        %v2360 = vadd.f32 %v2325, %v2352
        %v2361 = vadd.f32 %v2326, %v2352
        %v2362 = vadd.f32 %v2327, %v2352
        %v2363 = vadd.f32 %v2328, %v2352
        %v2364 = vadd.f32 %v2329, %v2352
        %v2365 = vadd.f32 %v2330, %v2352
        %v2366 = vadd.f32 %v2331, %v2352
        %v2367 = vadd.f32 %v2332, %v2352
        %v2368 = vadd.f32 %v2333, %v2352
        %v2369 = vadd.f32 %v2334, %v2352
        %v2370 = vadd.f32 %v2335, %v2352
        %v2371 = vadd.f32 %v2336, %v2352
        %v2372 = vadd.f32 %v2337, %v2352
        %v2373 = vadd.f32 %v2338, %v2352
        %v2374 = vadd.f32 %v2339, %v2352
        %v2375 = vadd.f32 %v2340, %v2352
        %v2376 = vadd.f32 %v2341, %v2352
        %v2377 = vadd.f32 %v2342, %v2352
        %v2378 = vadd.f32 %v2343, %v2352
        %v2379 = vadd.f32 %v2344, %v2352
        %v2380 = vadd.f32 %v2345, %v2352
        %v2381 = vadd.f32 %v2346, %v2352
        %v2382 = vadd.f32 %v2347, %v2352
        %v2383 = vadd.f32 %v2348, %v2352
        %v2384 = vadd.f32 %v2349, %v2352
        %v2385 = vadd.f32 %v2350, %v2352
        %v2386 = vmax.f32 %v2354, 0.0
        %v2387 = vmax.f32 %v2355, 0.0
        %v2388 = vmax.f32 %v2356, 0.0
        %v2389 = vmax.f32 %v2357, 0.0
        %v2390 = vmax.f32 %v2358, 0.0
        %v2391 = vmax.f32 %v2359, 0.0
        %v2392 = vmax.f32 %v2360, 0.0
        %v2393 = vmax.f32 %v2361, 0.0
        %v2394 = vmax.f32 %v2362, 0.0
        %v2395 = vmax.f32 %v2363, 0.0
        %v2396 = vmax.f32 %v2364, 0.0
        %v2397 = vmax.f32 %v2365, 0.0
        %v2398 = vmax.f32 %v2366, 0.0
        %v2399 = vmax.f32 %v2367, 0.0
        %v2400 = vmax.f32 %v2368, 0.0
        %v2401 = vmax.f32 %v2369, 0.0
        %v2402 = vmax.f32 %v2370, 0.0
        %v2403 = vmax.f32 %v2371, 0.0
        %v2404 = vmax.f32 %v2372, 0.0
        %v2405 = vmax.f32 %v2373, 0.0
        %v2406 = vmax.f32 %v2374, 0.0
        %v2407 = vmax.f32 %v2375, 0.0
        %v2408 = vmax.f32 %v2376, 0.0
        %v2409 = vmax.f32 %v2377, 0.0
        %v2410 = vmax.f32 %v2378, 0.0
        %v2411 = vmax.f32 %v2379, 0.0
        %v2412 = vmax.f32 %v2380, 0.0
        %v2413 = vmax.f32 %v2381, 0.0
        %v2414 = vmax.f32 %v2382, 0.0
        %v2415 = vmax.f32 %v2383, 0.0
        %v2416 = vmax.f32 %v2384, 0.0
        %v2417 = vmax.f32 %v2385, 0.0
        %2418 = vst [vmem:[%s290] sm:$0xff] %v2386
        %2419 = vst [vmem:[%s290 + $0x8] sm:$0xff] %v2387
        %2420 = vst [vmem:[%s290 + $0x10] sm:$0xff] %v2388
        %2421 = vst [vmem:[%s290 + $0x18] sm:$0xff] %v2389
        %2422 = vst [vmem:[%s290 + $0x20] sm:$0xff] %v2390
        %2423 = vst [vmem:[%s290 + $0x28] sm:$0xff] %v2391
        %2424 = vst [vmem:[%s290 + $0x30] sm:$0xff] %v2392
        %2425 = vst [vmem:[%s290 + $0x38] sm:$0xff] %v2393
        %2426 = vst [vmem:[%s290 + $0x40] sm:$0xff] %v2394
        %2427 = vst [vmem:[%s290 + $0x48] sm:$0xff] %v2395
        %2428 = vst [vmem:[%s290 + $0x50] sm:$0xff] %v2396
        %2429 = vst [vmem:[%s290 + $0x58] sm:$0xff] %v2397
        %2430 = vst [vmem:[%s290 + $0x60] sm:$0xff] %v2398
        %2431 = vst [vmem:[%s290 + $0x68] sm:$0xff] %v2399
        %2432 = vst [vmem:[%s290 + $0x70] sm:$0xff] %v2400
        %2433 = vst [vmem:[%s290 + $0x78] sm:$0xff] %v2401
        %2434 = vst [vmem:[%s290 + $0x80] sm:$0xff] %v2402
        %2435 = vst [vmem:[%s290 + $0x88] sm:$0xff] %v2403
        %2436 = vst [vmem:[%s290 + $0x90] sm:$0xff] %v2404
        %2437 = vst [vmem:[%s290 + $0x98] sm:$0xff] %v2405
        %2438 = vst [vmem:[%s290 + $0xa0] sm:$0xff] %v2406
        %2439 = vst [vmem:[%s290 + $0xa8] sm:$0xff] %v2407
        %2440 = vst [vmem:[%s290 + $0xb0] sm:$0xff] %v2408
        %2441 = vst [vmem:[%s290 + $0xb8] sm:$0xff] %v2409
        %2442 = vst [vmem:[%s290 + $0xc0] sm:$0xff] %v2410
        %2443 = vst [vmem:[%s290 + $0xc8] sm:$0xff] %v2411
        %2444 = vst [vmem:[%s290 + $0xd0] sm:$0xff] %v2412
        %2445 = vst [vmem:[%s290 + $0xd8] sm:$0xff] %v2413
        %2446 = vst [vmem:[%s290 + $0xe0] sm:$0xff] %v2414
        %2447 = vst [vmem:[%s290 + $0xe8] sm:$0xff] %v2415
        %2448 = vst [vmem:[%s290 + $0xf0] sm:$0xff] %v2416
        %2449 = vst [vmem:[%s290 + $0xf8] sm:$0xff] %v2417
        %v2450 = vadd.f32 %v2386, %v2387
        %v2451 = vadd.f32 %v2450, %v2388
        %v2452 = vadd.f32 %v2451, %v2389
        %v2453 = vadd.f32 %v2452, %v2390
        %v2454 = vadd.f32 %v2453, %v2391
        %v2455 = vadd.f32 %v2454, %v2392
        %v2456 = vadd.f32 %v2455, %v2393
        %v2457 = vadd.f32 %v2456, %v2394
        %v2458 = vadd.f32 %v2457, %v2395
        %v2459 = vadd.f32 %v2458, %v2396
        %v2460 = vadd.f32 %v2459, %v2397
        %v2461 = vadd.f32 %v2460, %v2398
        %v2462 = vadd.f32 %v2461, %v2399
        %v2463 = vadd.f32 %v2462, %v2400
        %v2464 = vadd.f32 %v2463, %v2401
        %v2465 = vadd.f32 %v2464, %v2402
        %v2466 = vadd.f32 %v2465, %v2403
        %v2467 = vadd.f32 %v2466, %v2404
        %v2468 = vadd.f32 %v2467, %v2405
        %v2469 = vadd.f32 %v2468, %v2406
        %v2470 = vadd.f32 %v2469, %v2407
        %v2471 = vadd.f32 %v2470, %v2408
        %v2472 = vadd.f32 %v2471, %v2409
        %v2473 = vadd.f32 %v2472, %v2410
        %v2474 = vadd.f32 %v2473, %v2411
        %v2475 = vadd.f32 %v2474, %v2412
        %v2476 = vadd.f32 %v2475, %v2413
        %v2477 = vadd.f32 %v2476, %v2414
        %v2478 = vadd.f32 %v2477, %v2415
        %v2479 = vadd.f32 %v2478, %v2416
        %v2480 = vadd.f32 %v2479, %v2417
        %v2481 = vrot.slane %v2480, 4
        %v2482 = vadd.f32 %v2480, %v2481
        %v2483 = vrot.slane %v2482, 2
        %v2484 = vadd.f32 %v2482, %v2483
        %v2485 = vrot.slane %v2484, 1
        %v2486 = vadd.f32 %v2484, %v2485
        %2487 = vst [vmem:[%s296] sm:$0x1] %v2486
        %v2488 = vmul.f32 %v2386, %v2386
        %v2489 = vmul.f32 %v2387, %v2387
        %v2490 = vmul.f32 %v2388, %v2388
        %v2491 = vmul.f32 %v2389, %v2389
        %v2492 = vmul.f32 %v2390, %v2390
        %v2493 = vmul.f32 %v2391, %v2391
        %v2494 = vmul.f32 %v2392, %v2392
        %v2495 = vmul.f32 %v2393, %v2393
        %v2496 = vmul.f32 %v2394, %v2394
        %v2497 = vmul.f32 %v2395, %v2395
        %v2498 = vmul.f32 %v2396, %v2396
        %v2499 = vmul.f32 %v2397, %v2397
        %v2500 = vmul.f32 %v2398, %v2398
        %v2501 = vmul.f32 %v2399, %v2399
        %v2502 = vmul.f32 %v2400, %v2400
        %v2503 = vmul.f32 %v2401, %v2401
        %v2504 = vmul.f32 %v2402, %v2402
        %v2505 = vmul.f32 %v2403, %v2403
        %v2506 = vmul.f32 %v2404, %v2404
        %v2507 = vmul.f32 %v2405, %v2405
        %v2508 = vmul.f32 %v2406, %v2406
        %v2509 = vmul.f32 %v2407, %v2407
        %v2510 = vmul.f32 %v2408, %v2408
        %v2511 = vmul.f32 %v2409, %v2409
        %v2512 = vmul.f32 %v2410, %v2410
        %v2513 = vmul.f32 %v2411, %v2411
        %v2514 = vmul.f32 %v2412, %v2412
        %v2515 = vmul.f32 %v2413, %v2413
        %v2516 = vmul.f32 %v2414, %v2414
        %v2517 = vmul.f32 %v2415, %v2415
        %v2518 = vmul.f32 %v2416, %v2416
        %v2519 = vmul.f32 %v2417, %v2417
        %v2520 = vadd.f32 %v2488, %v2489
        %v2521 = vadd.f32 %v2520, %v2490
        %v2522 = vadd.f32 %v2521, %v2491
        %v2523 = vadd.f32 %v2522, %v2492
        %v2524 = vadd.f32 %v2523, %v2493
        %v2525 = vadd.f32 %v2524, %v2494
        %v2526 = vadd.f32 %v2525, %v2495
        %v2527 = vadd.f32 %v2526, %v2496
        %v2528 = vadd.f32 %v2527, %v2497
        %v2529 = vadd.f32 %v2528, %v2498
        %v2530 = vadd.f32 %v2529, %v2499
        %v2531 = vadd.f32 %v2530, %v2500
        %v2532 = vadd.f32 %v2531, %v2501
        %v2533 = vadd.f32 %v2532, %v2502
        %v2534 = vadd.f32 %v2533, %v2503
        %v2535 = vadd.f32 %v2534, %v2504
        %v2536 = vadd.f32 %v2535, %v2505
        %v2537 = vadd.f32 %v2536, %v2506
        %v2538 = vadd.f32 %v2537, %v2507
        %v2539 = vadd.f32 %v2538, %v2508
        %v2540 = vadd.f32 %v2539, %v2509
        %v2541 = vadd.f32 %v2540, %v2510
        %v2542 = vadd.f32 %v2541, %v2511
        %v2543 = vadd.f32 %v2542, %v2512
        %v2544 = vadd.f32 %v2543, %v2513
        %v2545 = vadd.f32 %v2544, %v2514
        %v2546 = vadd.f32 %v2545, %v2515
        %v2547 = vadd.f32 %v2546, %v2516
        %v2548 = vadd.f32 %v2547, %v2517
        %v2549 = vadd.f32 %v2548, %v2518
        %v2550 = vadd.f32 %v2549, %v2519
        %v2551 = vrot.slane %v2550, 4
        %v2552 = vadd.f32 %v2550, %v2551
        %v2553 = vrot.slane %v2552, 2
        %v2554 = vadd.f32 %v2552, %v2553
        %v2555 = vrot.slane %v2554, 1
        %v2556 = vadd.f32 %v2554, %v2555
        %2557 = vst [vmem:[%s302] sm:$0x1] %v2556
        %s2558 = sand.u32 %s145, 1
        %s2559 = scalar_lea.sflag [#allocation3], %s2558
        %s2560 = sand.u32 %s145, 1
        %s2561 = smul.addr %s2560, 256
        %s2562 = scalar_lea.vmem [#allocation2], %s2561
        %s2563 = sand.u32 %s24, 1
        %s2564 = scalar_lea.sflag [#allocation5], %s2563
        %s2565 = sand.u32 %s173, 1
        %s2566 = scalar_lea.vmem [#allocation4], %s2565
        %s2567 = sand.u32 %s24, 1
        %s2568 = scalar_lea.sflag [#allocation5], %s2567
        %s2569 = sand.u32 %s201, 1
        %s2570 = scalar_lea.vmem [#allocation6], %s2569
        // Predicated region
        $region37: #{tpu_custom_call.1} parent=35 // pred_check
          %p2571 = pneg %p155
        $region38: #{tpu_custom_call.1} parent=35 // pred_check_branch
          %2573 = sbr.rel (%p2571) target = $region40
        $region39: #{tpu_custom_call.1} parent=35 // pred_region
          %2575 = vsyncadd %s2559, 0
          %s2576 = smul.addr %s28, 32
          %s2577 = sadd.s32 %s29, %s2576
          %s2578 = smul.addr %s2577, 8
          %s2579 = scalar_lea.hbm %s4, %s2578
          %s2580 = sshll.u32 %s2562, 4
          %s2581 = int_to_ptr.vmem [resolvable:$true] %s2580
          %s2582 = sshll.u32 %s2579, 4
          %s2583 = int_to_ptr.hbm [resolvable:$true] %s2582
          %2588 = dma.vmem_to_hbm [thread:$0]  %s2581, 4096, %s2583, %s2559, 128, 128, 8
        $region40: #{tpu_custom_call.1} parent=35 // pred_fallthru
          _
        // Predicated region
        $region41: #{tpu_custom_call.1} parent=35 // pred_check
          %p2589 = pneg %p183
        $region42: #{tpu_custom_call.1} parent=35 // pred_check_branch
          %2591 = sbr.rel (%p2589) target = $region44
        $region43: #{tpu_custom_call.1} parent=35 // pred_region
          %2593 = vsyncadd %s2564, 0
          %s2594 = sadd.s32 %s29, %s28
          %s2595 = scalar_lea.hbm %s5, %s2594
          %s2597 = sshll.u32 %s2566, 4
          %s2598 = int_to_ptr.vmem [resolvable:$true] %s2597
          %s2599 = sshll.u32 %s2595, 4
          %s2600 = int_to_ptr.hbm [resolvable:$true] %s2599
          %2602 = dma.vmem_to_hbm [thread:$0]  %s2598, 16, %s2600, %s2564
        $region44: #{tpu_custom_call.1} parent=35 // pred_fallthru
          _
        // Predicated region
        $region45: #{tpu_custom_call.1} parent=35 // pred_check
          %p2603 = pneg %p211
        $region46: #{tpu_custom_call.1} parent=35 // pred_check_branch
          %2605 = sbr.rel (%p2603) target = $region48
        $region47: #{tpu_custom_call.1} parent=35 // pred_region
          %2607 = vsyncadd %s2568, 0
          %s2608 = sadd.s32 %s29, %s28
          %s2609 = scalar_lea.hbm %s6, %s2608
          %s2611 = sshll.u32 %s2570, 4
          %s2612 = int_to_ptr.vmem [resolvable:$true] %s2611
          %s2613 = sshll.u32 %s2609, 4
          %s2614 = int_to_ptr.hbm [resolvable:$true] %s2613
          %2616 = dma.vmem_to_hbm [thread:$0]  %s2612, 16, %s2614, %s2568
        $region48: #{tpu_custom_call.1} parent=35 // pred_fallthru
          _
      $region36: #{tpu_custom_call.1} parent=5 // pred_fallthru
        _
      %p2617 = scmp.le.s32.totalorder 2, %s19
      // Predicated region
      $region49: #{tpu_custom_call.1} parent=5 // pred_check
        %p2618 = pneg %p2617
      $region50: #{tpu_custom_call.1} parent=5 // pred_check_branch
        %2620 = sbr.rel (%p2618) target = $region52
      $region51: #{tpu_custom_call.1} parent=5 // pred_region
        %s2621 = ssub.s32 %s19, 2
        // Predicated region
        $region53: #{tpu_custom_call.1} parent=51 // pred_check
          %p2622 = pneg %p161
        $region54: #{tpu_custom_call.1} parent=51 // pred_check_branch
          %2624 = sbr.rel (%p2622) target = $region56
        $region55: #{tpu_custom_call.1} parent=51 // pred_region
          %s2625 = sand.u32 %s146, 1
          %s2626 = scalar_lea.sflag [#allocation3], %s2625
          %s2627 = sand.u32 %s146, 1
          %s2628 = smul.addr %s2627, 256
          %s2629 = scalar_lea.vmem [#allocation2], %s2628
          %2631 = dma.done %s2626, 4096
        $region56: #{tpu_custom_call.1} parent=51 // pred_fallthru
          _
        // Predicated region
        $region57: #{tpu_custom_call.1} parent=51 // pred_check
          %p2632 = pneg %p189
        $region58: #{tpu_custom_call.1} parent=51 // pred_check_branch
          %2634 = sbr.rel (%p2632) target = $region60
        $region59: #{tpu_custom_call.1} parent=51 // pred_region
          %s2635 = sand.u32 %s25, 1
          %s2636 = scalar_lea.sflag [#allocation5], %s2635
          %s2637 = sand.u32 %s174, 1
          %s2638 = scalar_lea.vmem [#allocation4], %s2637
          %2640 = dma.done %s2636, 16
        $region60: #{tpu_custom_call.1} parent=51 // pred_fallthru
          _
        // Predicated region
        $region61: #{tpu_custom_call.1} parent=51 // pred_check
          %p2641 = pneg %p217
        $region62: #{tpu_custom_call.1} parent=51 // pred_check_branch
          %2643 = sbr.rel (%p2641) target = $region64
        $region63: #{tpu_custom_call.1} parent=51 // pred_region
          %s2644 = sand.u32 %s25, 1
          %s2645 = scalar_lea.sflag [#allocation5], %s2644
          %s2646 = sand.u32 %s202, 1
          %s2647 = scalar_lea.vmem [#allocation6], %s2646
          %2649 = dma.done %s2645, 16
        $region64: #{tpu_custom_call.1} parent=51 // pred_fallthru
          _
      $region52: #{tpu_custom_call.1} parent=5 // pred_fallthru
        _
    $region6: #{tpu_custom_call.1} parent=1 // loop_footer
      %s23 = sadd.s32 1, %s19
    $region7: #{tpu_custom_call.1} parent=1 // loop_footer_branch
      %18 = sbr.rel target = $region3
    $region8: #{tpu_custom_call.1} parent=1 // loop_exit
      _
    %2650 = vsyncpa [#allocation3], 1
    %s2651 = scalar_lea.sflag [#allocation3], 1
    %2652 = vsyncpa %s2651, 1
    %2653 = vsyncpa [#allocation5], 1
    %s2654 = scalar_lea.sflag [#allocation5], 1
    %2655 = vsyncpa %s2654, 1

</llo_original>
